<compile_context>
chip_gen: v7x
topology: tpu7x:2x2x1
jax: 0.10.0
libtpu: 0.0.40
codegen_flags: <defaults>
</compile_context>

<pallas_src>
import math

import jax
import jax.numpy as jnp
from jax.experimental import pallas as pl
from jax.experimental.pallas import tpu as pltpu


# ----------------------------- Pallas kernel ------------------------------- #

def _decoder_kernel(x_ref, pm_ref, rt_ref, recT_ref, gateR_ref,
                    w1_ref, b1_ref, w2_ref, b2_ref,
                    wo1x_ref, wo1m_ref, bo1_ref,
                    wo2_ref, bo2_ref, wo3_ref, bo3_ref,
                    out_ref):
    cdt = w1_ref.dtype                     # compute dtype fed to the MXU
    x = x_ref[...]                         # (rows_n, D)  f32 (exact residual)
    pm = pm_ref[...]                       # (rows_e, 2D) cdt
    recT = recT_ref[0]                     # (rows_n, rows_e) f32 block-diag rel_rec^T

    # fused message MLP: all kept edge types in a single matmul pair
    h1 = jnp.dot(pm, w1_ref[...], preferred_element_type=jnp.float32) + b1_ref[...]
    h1 = jnp.maximum(h1, 0.0)
    # dropout p = 0.0 -> identity
    h2 = (jnp.dot(h1.astype(cdt), w2_ref[...], preferred_element_type=jnp.float32)
          + b2_ref[...])
    h2 = jnp.maximum(h2, 0.0)              # (rows_e, Kn*M)

    # per-edge-type gate: expand rel_type (rows_e, K) -> (rows_e, Kn*M) on the
    # otherwise-idle MXU (replaces XLA repeat + in-kernel lane slices)
    gate = jnp.dot(rt_ref[...], gateR_ref[...], preferred_element_type=jnp.float32)
    gated = h2 * gate                      # f32

    # edge -> node aggregation; f32 operands so the 0/1 aggregation is exact.
    # The per-type sum is folded into wo1m (K stacked copies) -> no slicing.
    aggf = jnp.dot(recT, gated, preferred_element_type=jnp.float32)   # (rows_n, Kn*M)

    # output MLP on concat([x, agg]) (first layer split to avoid in-kernel concat)
    h = (jnp.dot(x.astype(cdt), wo1x_ref[...], preferred_element_type=jnp.float32)
         + jnp.dot(aggf.astype(cdt), wo1m_ref[...], preferred_element_type=jnp.float32)
         + bo1_ref[...])
    h = jnp.maximum(h, 0.0)
    h = jnp.maximum(
        jnp.dot(h.astype(cdt), wo2_ref[...], preferred_element_type=jnp.float32)
        + bo2_ref[...], 0.0)
    pred = (jnp.dot(h.astype(cdt), wo3_ref[...], preferred_element_type=jnp.float32)
            + bo3_ref[...])

    out_ref[...] = x + pred                # residual, f32


# ---------------------- hoisted (x-independent) constants ------------------- #

def _default_num_chunks():
    """Use 2 grid chunks only on parts with 2 TensorCores/chip (v7x)."""
    try:
        kind = jax.devices()[0].device_kind.lower()
    except Exception:
        return 1
    return 2 if "v7" in kind else 1


def build_decoder_constants(params, rel_rec, bt, *, skip_first,
                            edge_types_list, use_bf16=True, num_chunks=None):
    """Precompute every x-independent kernel operand (call ONCE, reuse per step)."""
    E, N = rel_rec.shape
    K = params['w1r'].shape[0]
    D = params['w1r'].shape[1]
    H = params['w1r'].shape[-1]
    M = params['w2'].shape[-1]
    G = params['wo2'].shape[-1]
    cdt = jnp.bfloat16 if use_bf16 else jnp.float32

    # generation-aware grid split (1 on v5e/v6e, 2 on v7x) with alignment guard
    nb = _default_num_chunks() if num_chunks is None else num_chunks
    if nb > 1:
        chunk = bt // max(nb, 1)
        row_mult = 16 if use_bf16 else 8
        if bt % nb != 0 or (chunk * E) % row_mult != 0 or (chunk * N) % 8 != 0:
            nb = 1
    nb = max(nb, 1)
    chunk = bt // nb

    # edge types actually computed (skip_first drops the first of each block)
    non_null = list(range(K))
    if skip_first:
        edge = 0
        for k in edge_types_list:
            non_null.remove(edge)
            edge += k
    assert non_null, "skip_first removed every edge type"
    Kn = len(non_null)
    idx = jnp.asarray(non_null, jnp.int32)

    # fused message-MLP weights over kept types: W1 concat -> (2D, Kn*H),
    # W2 block-diagonal -> (Kn*H, Kn*M)
    w1f = jnp.concatenate([params['w1r'][idx], params['w1s'][idx]], axis=1)
    w1f = jnp.transpose(w1f, (1, 0, 2)).reshape(2 * D, Kn * H).astype(cdt)
    b1f = jnp.transpose(params['b1'][idx], (1, 0, 2)).reshape(1, Kn * H)
    b1f = b1f.astype(jnp.float32)
    w2bd = jnp.zeros((Kn * H, Kn * M), jnp.float32)
    for j in range(Kn):
        w2bd = w2bd.at[j * H:(j + 1) * H, j * M:(j + 1) * M].set(
            params['w2'][non_null[j]])
    w2bd = w2bd.astype(cdt)
    b2f = jnp.transpose(params['b2'][idx], (1, 0, 2)).reshape(1, Kn * M)
    b2f = b2f.astype(jnp.float32)

    # gate expansion matrix: (K, Kn*M); block j is ones on row non_null[j]
    gateR = jnp.zeros((K, Kn * M), jnp.float32)
    for j in range(Kn):
        gateR = gateR.at[non_null[j], j * M:(j + 1) * M].set(1.0)

    # fold the per-type message sum into out_fc1's message weight
    wo1m_exp = jnp.tile(params['wo1m'], (Kn, 1)).astype(cdt)          # (Kn*M, G)

    # block-diagonal rel_rec^T for one chunk (same block for every grid step
    # -> single resident copy, constant index_map).
    # TODO(synk): at production B*T on v7x (64 MiB VMEM) replace this quadratic
    # kron with a batched 'ne,cem->cnm' contraction inside the kernel.
    recT = jnp.kron(jnp.eye(chunk, dtype=jnp.float32),
                    rel_rec.T.astype(jnp.float32))[None]              # (1, cN, cE)

    consts = dict(
        w1f=w1f, b1f=b1f, w2bd=w2bd, b2f=b2f, gateR=gateR, recT=recT,
        wo1x=params['wo1x'].astype(cdt), wo1m=wo1m_exp,
        bo1=params['bo1'].astype(jnp.float32),
        wo2=params['wo2'].astype(cdt), bo2=params['bo2'].astype(jnp.float32),
        wo3=params['wo3'].astype(cdt), bo3=params['bo3'].astype(jnp.float32))
    meta = dict(nb=nb, chunk=chunk, K=K, Kn=Kn, H=H, M=M, D=D, G=G, E=E, N=N,
                use_bf16=use_bf16)
    return consts, meta


# ------------------------------ kernel wrapper ------------------------------ #

def single_step_pallas(consts, meta, x, rel_rec, rel_send, rel_type):
    """x: [B, T, N, D], rel_type: [B, T, E, K] -> [B, T, N, D]"""
    B, T, N, D = x.shape
    E = rel_rec.shape[0]
    K, Kn, H, M, G = meta['K'], meta['Kn'], meta['H'], meta['M'], meta['G']
    BT = B * T
    nb, chunk = meta['nb'], meta['chunk']
    assert chunk * nb == BT and N == meta['N'] and D == meta['D'] and E == meta['E']
    rows_n, rows_e = chunk * N, chunk * E
    cdt = jnp.bfloat16 if meta['use_bf16'] else jnp.float32

    xb = x.reshape(BT, N, D).astype(jnp.float32)
    x_flat = xb.reshape(BT * N, D)                       # f32 (exact residual)

    # one-hot receiver/sender gather hoisted to XLA; pre-concat so the kernel
    # sees one lane-dense (rows_e, 2D) operand for the fused first-layer matmul
    recv = jnp.einsum('en,bnd->bed', rel_rec.astype(jnp.float32), xb)
    send = jnp.einsum('en,bnd->bed', rel_send.astype(jnp.float32), xb)
    pre_msg = jnp.concatenate([recv, send], axis=-1).reshape(BT * E, 2 * D)
    pre_msg = pre_msg.astype(cdt)

    rt = rel_type.reshape(BT * E, K).astype(jnp.float32)

    def rep2(shape):  # replicated (weight / bias) operand, resident block
        return pl.BlockSpec(shape, lambda i: (0, 0))

    operands = (x_flat, pre_msg, rt, consts['recT'], consts['gateR'],
                consts['w1f'], consts['b1f'], consts['w2bd'], consts['b2f'],
                consts['wo1x'], consts['wo1m'], consts['bo1'],
                consts['wo2'], consts['bo2'], consts['wo3'], consts['bo3'])

    flops = 2 * (BT * E * (2 * D * Kn * H + Kn * H * Kn * M + K * Kn * M)
                 + nb * rows_n * rows_e * Kn * M
                 + BT * N * (D * G + Kn * M * G + G * G + G * D))
    bytes_accessed = sum(int(a.size) * a.dtype.itemsize for a in operands)
    bytes_accessed += BT * N * D * 4
    cost = pl.CostEstimate(flops=flops, transcendentals=0,
                           bytes_accessed=bytes_accessed)

    out = pl.pallas_call(
        _decoder_kernel,
        out_shape=jax.ShapeDtypeStruct((BT * N, D), jnp.float32),
        grid_spec=pltpu.PrefetchScalarGridSpec(
            num_scalar_prefetch=0,
            grid=(nb,),
            in_specs=[
                pl.BlockSpec((rows_n, D), lambda i: (i, 0)),             # x (f32)
                pl.BlockSpec((rows_e, 2 * D), lambda i: (i, 0)),         # pre_msg
                pl.BlockSpec((rows_e, K), lambda i: (i, 0)),             # rel_type
                pl.BlockSpec((1, rows_n, rows_e), lambda i: (0, 0, 0)),  # recT (resident)
                rep2((K, Kn * M)),                                       # gate expand
                rep2((2 * D, Kn * H)),                                   # W1 fused
                rep2((1, Kn * H)),                                       # b1 fused
                rep2((Kn * H, Kn * M)),                                  # W2 block-diag
                rep2((1, Kn * M)),                                       # b2 fused
                rep2((D, G)),                                            # out_fc1 (x half)
                rep2((Kn * M, G)),                                       # out_fc1 (msg half)
                rep2((1, G)),                                            # out_fc1 bias
                rep2((G, G)),                                            # out_fc2
                rep2((1, G)),                                            # out_fc2 bias
                rep2((G, D)),                                            # out_fc3
                rep2((1, D)),                                            # out_fc3 bias
            ],
            out_specs=pl.BlockSpec((rows_n, D), lambda i: (i, 0)),
        ),
        compiler_params=pltpu.CompilerParams(
            dimension_semantics=("parallel",)),
        cost_estimate=cost,
    )(*operands)

    return out.reshape(B, T, N, D)


# ------------------------ plain-JAX reference (check) ----------------------- #

def single_step_ref(params, x, rel_rec, rel_send, rel_type):
    receivers = jnp.einsum('en,btnd->bted', rel_rec, x)
    senders = jnp.einsum('en,btnd->bted', rel_send, x)
    K = params['w1r'].shape[0]
    all_msgs = 0.0
    for i in range(K):
        h = jax.nn.relu(receivers @ params['w1r'][i]
                        + senders @ params['w1s'][i] + params['b1'][i])
        m = jax.nn.relu(h @ params['w2'][i] + params['b2'][i])
        all_msgs = all_msgs + m * rel_type[..., i:i + 1]
    agg = jnp.einsum('en,btem->btnm', rel_rec, all_msgs)
    h = jax.nn.relu(x @ params['wo1x'] + agg @ params['wo1m'] + params['bo1'])
    h = jax.nn.relu(h @ params['wo2'] + params['bo2'])
    pred = h @ params['wo3'] + params['bo3']
    return x + pred


# ------------------------------- full forward ------------------------------- #

def softplus_beta(x, beta):
    # torch.nn.functional.softplus semantics (threshold branch for stability)
    z = beta * x
    return jnp.where(z > 20.0, x,
                     (1.0 / beta) * jnp.log1p(jnp.exp(jnp.minimum(z, 20.0))))


def forward(params, inputs, rel_type, rel_rec, rel_send, sigma, beta, rng,
            *, skip_first=False, edge_types_list=(2,), pred_steps=1,
            use_bf16=True, consts=None, meta=None):
    """sigmavariable=True path of MLPDecoder_multi_randomfeatures.forward.

    inputs : [B, N, T, 4], sigma : [B, N, T, S], rel_type : [B, E, K].
    Pass precomputed (consts, meta) from build_decoder_constants() to keep the
    weight/structure preprocessing out of the per-call hot path.
    """
    B, Nn, T, _ = inputs.shape
    x = jnp.concatenate([inputs, sigma], axis=3)
    random_feature_label = 0.5 * jax.random.normal(
        rng, (sigma.shape[0], sigma.shape[1], sigma.shape[2], 1), dtype=jnp.float32)
    x = jnp.concatenate([x, random_feature_label], axis=3)
    x = jnp.transpose(x, (0, 2, 1, 3))                   # [B, T, N, D]
    D = x.shape[-1]
    E, K = rel_type.shape[1], rel_type.shape[2]
    rel_type_e = jnp.broadcast_to(rel_type[:, None, :, :], (B, T, E, K))

    assert pred_steps == 1  # TODO(synk): pred_steps>1 strided-rewrite loop not wired up
    last_pred = x[:, 0::pred_steps]
    curr_rel_type = rel_type_e[:, 0::pred_steps]

    if consts is None or meta is None:
        consts, meta = build_decoder_constants(
            params, rel_rec, B * T, skip_first=skip_first,
            edge_types_list=edge_types_list, use_bf16=use_bf16)

    output = single_step_pallas(consts, meta, last_pred, rel_rec, rel_send,
                                curr_rel_type)           # [B, T, N, D]

    future = output[:, 1:]
    current = output[:, :-1]
    acc = future[..., 2:4] - current[..., 2:4]
    vel = future[..., 0:2] - current[..., 0:2]
    acc = jnp.concatenate([jnp.zeros((B, 1, Nn, 2), jnp.float32), acc], axis=1)
    vel = jnp.concatenate([jnp.zeros((B, 1, Nn, 2), jnp.float32), vel], axis=1)

    pred_all = output[:, :T - 1]
    accel = acc[:, :T - 1]
    velocity = vel[:, :T - 1]

    sigma_1 = pred_all[..., 4:D - 1]                     # learned sigma features
    sigma_1 = jnp.transpose(sigma_1, (0, 2, 1, 3))
    sigma_1 = softplus_beta(sigma_1, beta)
    pred_all = pred_all[..., 0:4]

    return (jnp.transpose(pred_all, (0, 2, 1, 3)),
            sigma_1,
            jnp.transpose(accel, (0, 2, 1, 3)),
            jnp.transpose(velocity, (0, 2, 1, 3)))


# ------------------------------ parameter init ------------------------------ #

def init_params(key, n_in_node, edge_types, msg_hid, msg_out, n_hid):
    D, K, H, M, G = n_in_node, edge_types, msg_hid, msg_out, n_hid

    def linear(k, fan_in, fan_out):
        k1, k2 = jax.random.split(k)
        bound = 1.0 / math.sqrt(fan_in)
        w = jax.random.uniform(k1, (fan_in, fan_out), jnp.float32, -bound, bound)
        b = jax.random.uniform(k2, (1, fan_out), jnp.float32, -bound, bound)
        return w, b

    ks = jax.random.split(key, 2 * K + 3)
    w1, b1, w2, b2 = [], [], [], []
    for i in range(K):
        w, b = linear(ks[2 * i], 2 * D, H)
        w1.append(w); b1.append(b)
        w, b = linear(ks[2 * i + 1], H, M)
        w2.append(w); b2.append(b)
    w1 = jnp.stack(w1); b1 = jnp.stack(b1)      # (K, 2D, H), (K, 1, H)
    w2 = jnp.stack(w2); b2 = jnp.stack(b2)      # (K, H, M), (K, 1, M)
    wo1, bo1 = linear(ks[2 * K], D + M, G)
    wo2, bo2 = linear(ks[2 * K + 1], G, G)
    wo3, bo3 = linear(ks[2 * K + 2], G, D)
    return dict(w1r=w1[:, :D], w1s=w1[:, D:], b1=b1, w2=w2, b2=b2,
                wo1x=wo1[:D], wo1m=wo1[D:], bo1=bo1,
                wo2=wo2, bo2=bo2, wo3=wo3, bo3=bo3)


# ---------------------------------- main ------------------------------------ #

if __name__ == "__main__":
    key = jax.random.PRNGKey(0)
    k_par, k_in, k_sig, k_rt, k_rf = jax.random.split(key, 5)

    B, N, T = 2, 5, 8           # batch, atoms, timesteps
    feat, sig_dim = 4, 1        # pos+vel features, sigma features per node
    D = feat + sig_dim + 1      # n_in_node (after concat of sigma + random feature)
    K = 2                       # edge_types
    H = M = G = 32              # msg_hid, msg_out, n_hid
    E = N * (N - 1)
    beta = 1.0

    params = init_params(k_par, D, K, H, M, G)

    inputs = jax.random.normal(k_in, (B, N, T, feat), dtype=jnp.float32)
    sigma = jax.random.uniform(k_sig, (B, N, T, sig_dim), dtype=jnp.float32)
    rel_type = jax.nn.softmax(
        jax.random.normal(k_rt, (B, E, K), dtype=jnp.float32), axis=-1)

    # fully connected relation graph (no self loops), one-hot rel_rec / rel_send
    pairs = [(i, j) for i in range(N) for j in range(N) if i != j]
    rel_rec = jnp.array([[1.0 if c == i else 0.0 for c in range(N)]
                         for (i, j) in pairs], dtype=jnp.float32)
    rel_send = jnp.array([[1.0 if c == j else 0.0 for c in range(N)]
                          for (i, j) in pairs], dtype=jnp.float32)

    # hoist the x-independent preprocessing out of the hot path (built once)
    consts_bf16, meta_bf16 = build_decoder_constants(
        params, rel_rec, B * T, skip_first=False, edge_types_list=(K,),
        use_bf16=True)
    consts_f32, meta_f32 = build_decoder_constants(
        params, rel_rec, B * T, skip_first=False, edge_types_list=(K,),
        use_bf16=False)
    jax.block_until_ready((consts_bf16, consts_f32))

    pred_all, sigma_1, accel, velocity = forward(
        params, inputs, rel_type, rel_rec, rel_send, sigma, beta, k_rf,
        consts=consts_bf16, meta=meta_bf16)
    jax.block_until_ready((pred_all, sigma_1, accel, velocity))

    # correctness check of the Pallas hot path against a plain-JAX reference
    x_full = jnp.concatenate(
        [inputs, sigma,
         0.5 * jax.random.normal(k_rf, (B, N, T, 1), dtype=jnp.float32)], axis=3)
    x_full = jnp.transpose(x_full, (0, 2, 1, 3))
    rt_e = jnp.broadcast_to(rel_type[:, None], (B, T, E, K))
    out_ref = single_step_ref(params, x_full, rel_rec, rel_send, rt_e)

    # f32 operands: tight check
    out_f32 = single_step_pallas(consts_f32, meta_f32, x_full, rel_rec,
                                 rel_send, rt_e)
    err32 = float(jnp.max(jnp.abs(out_f32 - out_ref)))
    assert jnp.allclose(out_f32, out_ref, rtol=1e-2, atol=1e-2), err32

    # bf16 MXU operands (f32 accumulation + f32 aggregation): looser check
    out_bf16 = single_step_pallas(consts_bf16, meta_bf16, x_full, rel_rec,
                                  rel_send, rt_e)
    errbf = float(jnp.max(jnp.abs(out_bf16 - out_ref)))
    assert jnp.allclose(out_bf16, out_ref, rtol=5e-2, atol=5e-2), errbf

    assert pred_all.shape == (B, N, T - 1, 4)
    assert sigma_1.shape == (B, N, T - 1, 1)
    assert accel.shape == (B, N, T - 1, 2)
    assert velocity.shape == (B, N, T - 1, 2)

    print("KERNEL_OK")
</pallas_src>

<mosaic_0001>
module attributes {stable_mosaic.version = 11 : i64} {
  func.func @_decoder_kernel(%arg0: i32, %arg1: memref<80x6xf32, #tpu.memory_space<vmem>>, %arg2: memref<320x12xbf16, #tpu.memory_space<vmem>>, %arg3: memref<320x2xf32, #tpu.memory_space<vmem>>, %arg4: memref<1x80x320xf32, #tpu.memory_space<vmem>>, %arg5: memref<2x64xf32, #tpu.memory_space<vmem>>, %arg6: memref<12x64xbf16, #tpu.memory_space<vmem>>, %arg7: memref<1x64xf32, #tpu.memory_space<vmem>>, %arg8: memref<64x64xbf16, #tpu.memory_space<vmem>>, %arg9: memref<1x64xf32, #tpu.memory_space<vmem>>, %arg10: memref<6x32xbf16, #tpu.memory_space<vmem>>, %arg11: memref<64x32xbf16, #tpu.memory_space<vmem>>, %arg12: memref<1x32xf32, #tpu.memory_space<vmem>>, %arg13: memref<32x32xbf16, #tpu.memory_space<vmem>>, %arg14: memref<1x32xf32, #tpu.memory_space<vmem>>, %arg15: memref<32x6xbf16, #tpu.memory_space<vmem>>, %arg16: memref<1x6xf32, #tpu.memory_space<vmem>>, %arg17: memref<80x6xf32, #tpu.memory_space<vmem>>) attributes {dimension_semantics = [#tpu.dimension_semantics<parallel>], iteration_bounds = array<i64: 1>, scalar_prefetch = 0 : i64, scratch_operands = 0 : i64, tpu.core_type = #tpu.core_type<tc>, window_params = [{transform_indices = @transform_0, window_bounds = array<i64: 80, 6>}, {transform_indices = @transform_1, window_bounds = array<i64: 320, 12>}, {transform_indices = @transform_2, window_bounds = array<i64: 320, 2>}, {pipeline_mode = #tpu.pipeline_mode<synchronous>, transform_indices = @transform_3, window_bounds = array<i64: 1, 80, 320>}, {pipeline_mode = #tpu.pipeline_mode<synchronous>, transform_indices = @transform_4, window_bounds = array<i64: 2, 64>}, {pipeline_mode = #tpu.pipeline_mode<synchronous>, transform_indices = @transform_5, window_bounds = array<i64: 12, 64>}, {pipeline_mode = #tpu.pipeline_mode<synchronous>, transform_indices = @transform_6, window_bounds = array<i64: 1, 64>}, {pipeline_mode = #tpu.pipeline_mode<synchronous>, transform_indices = @transform_7, window_bounds = array<i64: 64, 64>}, {pipeline_mode = #tpu.pipeline_mode<synchronous>, transform_indices = @transform_8, window_bounds = array<i64: 1, 64>}, {pipeline_mode = #tpu.pipeline_mode<synchronous>, transform_indices = @transform_9, window_bounds = array<i64: 6, 32>}, {pipeline_mode = #tpu.pipeline_mode<synchronous>, transform_indices = @transform_10, window_bounds = array<i64: 64, 32>}, {pipeline_mode = #tpu.pipeline_mode<synchronous>, transform_indices = @transform_11, window_bounds = array<i64: 1, 32>}, {pipeline_mode = #tpu.pipeline_mode<synchronous>, transform_indices = @transform_12, window_bounds = array<i64: 32, 32>}, {pipeline_mode = #tpu.pipeline_mode<synchronous>, transform_indices = @transform_13, window_bounds = array<i64: 1, 32>}, {pipeline_mode = #tpu.pipeline_mode<synchronous>, transform_indices = @transform_14, window_bounds = array<i64: 32, 6>}, {pipeline_mode = #tpu.pipeline_mode<synchronous>, transform_indices = @transform_15, window_bounds = array<i64: 1, 6>}, {transform_indices = @transform_16, window_bounds = array<i64: 80, 6>}]} {
    %c0 = arith.constant 0 : index
    %c0_0 = arith.constant 0 : index
    %0 = vector.load %arg1[%c0, %c0_0] : memref<80x6xf32, #tpu.memory_space<vmem>>, vector<80x6xf32>
    %c0_1 = arith.constant 0 : index
    %c0_2 = arith.constant 0 : index
    %1 = vector.load %arg2[%c0_1, %c0_2] : memref<320x12xbf16, #tpu.memory_space<vmem>>, vector<320x12xbf16>
    %c0_3 = arith.constant 0 : index
    %c0_4 = arith.constant 0 : index
    %c0_5 = arith.constant 0 : index
    %2 = vector.load %arg4[%c0_3, %c0_4, %c0_5] : memref<1x80x320xf32, #tpu.memory_space<vmem>>, vector<1x80x320xf32>
    %3 = vector.shape_cast %2 : vector<1x80x320xf32> to vector<80x320xf32>
    %c0_6 = arith.constant 0 : index
    %c0_7 = arith.constant 0 : index
    %4 = vector.load %arg6[%c0_6, %c0_7] : memref<12x64xbf16, #tpu.memory_space<vmem>>, vector<12x64xbf16>
    %cst = arith.constant dense<0.000000e+00> : vector<320x64xf32>
    %5 = tpu.matmul %1, %4, %cst {dimension_numbers = #tpu.dot_dimension_numbers<[1], [0], [0], [1], [0, 0, 1, 1], [], []>} : vector<320x12xbf16>, vector<12x64xbf16>, vector<320x64xf32> -> vector<320x64xf32>
    %c0_8 = arith.constant 0 : index
    %c0_9 = arith.constant 0 : index
    %6 = vector.load %arg7[%c0_8, %c0_9] : memref<1x64xf32, #tpu.memory_space<vmem>>, vector<1x64xf32>
    %7 = vector.broadcast %6 : vector<1x64xf32> to vector<320x64xf32>
    %8 = arith.addf %5, %7 : vector<320x64xf32>
    %cst_10 = arith.constant 0.000000e+00 : f32
    %9 = vector.broadcast %cst_10 : f32 to vector<320x64xf32>
    %10 = arith.maximumf %8, %9 : vector<320x64xf32>
    %11 = arith.truncf %10 : vector<320x64xf32> to vector<320x64xbf16>
    %c0_11 = arith.constant 0 : index
    %c0_12 = arith.constant 0 : index
    %12 = vector.load %arg8[%c0_11, %c0_12] : memref<64x64xbf16, #tpu.memory_space<vmem>>, vector<64x64xbf16>
    %cst_13 = arith.constant dense<0.000000e+00> : vector<320x64xf32>
    %13 = tpu.matmul %11, %12, %cst_13 {dimension_numbers = #tpu.dot_dimension_numbers<[1], [0], [0], [1], [0, 0, 1, 1], [], []>} : vector<320x64xbf16>, vector<64x64xbf16>, vector<320x64xf32> -> vector<320x64xf32>
    %c0_14 = arith.constant 0 : index
    %c0_15 = arith.constant 0 : index
    %14 = vector.load %arg9[%c0_14, %c0_15] : memref<1x64xf32, #tpu.memory_space<vmem>>, vector<1x64xf32>
    %15 = vector.broadcast %14 : vector<1x64xf32> to vector<320x64xf32>
    %16 = arith.addf %13, %15 : vector<320x64xf32>
    %cst_16 = arith.constant 0.000000e+00 : f32
    %17 = vector.broadcast %cst_16 : f32 to vector<320x64xf32>
    %18 = arith.maximumf %16, %17 : vector<320x64xf32>
    %c0_17 = arith.constant 0 : index
    %c0_18 = arith.constant 0 : index
    %19 = vector.load %arg3[%c0_17, %c0_18] : memref<320x2xf32, #tpu.memory_space<vmem>>, vector<320x2xf32>
    %c0_19 = arith.constant 0 : index
    %c0_20 = arith.constant 0 : index
    %20 = vector.load %arg5[%c0_19, %c0_20] : memref<2x64xf32, #tpu.memory_space<vmem>>, vector<2x64xf32>
    %cst_21 = arith.constant dense<0.000000e+00> : vector<320x64xf32>
    %21 = tpu.matmul %19, %20, %cst_21 {dimension_numbers = #tpu.dot_dimension_numbers<[1], [0], [0], [1], [0, 0, 1, 1], [], []>} : vector<320x2xf32>, vector<2x64xf32>, vector<320x64xf32> -> vector<320x64xf32>
    %22 = arith.mulf %18, %21 : vector<320x64xf32>
    %cst_22 = arith.constant dense<0.000000e+00> : vector<80x64xf32>
    %23 = tpu.matmul %3, %22, %cst_22 {dimension_numbers = #tpu.dot_dimension_numbers<[1], [0], [0], [1], [0, 0, 1, 1], [], []>} : vector<80x320xf32>, vector<320x64xf32>, vector<80x64xf32> -> vector<80x64xf32>
    %24 = arith.truncf %0 : vector<80x6xf32> to vector<80x6xbf16>
    %c0_23 = arith.constant 0 : index
    %c0_24 = arith.constant 0 : index
    %25 = vector.load %arg10[%c0_23, %c0_24] : memref<6x32xbf16, #tpu.memory_space<vmem>>, vector<6x32xbf16>
    %cst_25 = arith.constant dense<0.000000e+00> : vector<80x32xf32>
    %26 = tpu.matmul %24, %25, %cst_25 {dimension_numbers = #tpu.dot_dimension_numbers<[1], [0], [0], [1], [0, 0, 1, 1], [], []>} : vector<80x6xbf16>, vector<6x32xbf16>, vector<80x32xf32> -> vector<80x32xf32>
    %27 = arith.truncf %23 : vector<80x64xf32> to vector<80x64xbf16>
    %c0_26 = arith.constant 0 : index
    %c0_27 = arith.constant 0 : index
    %28 = vector.load %arg11[%c0_26, %c0_27] : memref<64x32xbf16, #tpu.memory_space<vmem>>, vector<64x32xbf16>
    %cst_28 = arith.constant dense<0.000000e+00> : vector<80x32xf32>
    %29 = tpu.matmul %27, %28, %cst_28 {dimension_numbers = #tpu.dot_dimension_numbers<[1], [0], [0], [1], [0, 0, 1, 1], [], []>} : vector<80x64xbf16>, vector<64x32xbf16>, vector<80x32xf32> -> vector<80x32xf32>
    %30 = arith.addf %26, %29 : vector<80x32xf32>
    %c0_29 = arith.constant 0 : index
    %c0_30 = arith.constant 0 : index
    %31 = vector.load %arg12[%c0_29, %c0_30] : memref<1x32xf32, #tpu.memory_space<vmem>>, vector<1x32xf32>
    %32 = vector.broadcast %31 : vector<1x32xf32> to vector<80x32xf32>
    %33 = arith.addf %30, %32 : vector<80x32xf32>
    %cst_31 = arith.constant 0.000000e+00 : f32
    %34 = vector.broadcast %cst_31 : f32 to vector<80x32xf32>
    %35 = arith.maximumf %33, %34 : vector<80x32xf32>
    %36 = arith.truncf %35 : vector<80x32xf32> to vector<80x32xbf16>
    %c0_32 = arith.constant 0 : index
    %c0_33 = arith.constant 0 : index
    %37 = vector.load %arg13[%c0_32, %c0_33] : memref<32x32xbf16, #tpu.memory_space<vmem>>, vector<32x32xbf16>
    %cst_34 = arith.constant dense<0.000000e+00> : vector<80x32xf32>
    %38 = tpu.matmul %36, %37, %cst_34 {dimension_numbers = #tpu.dot_dimension_numbers<[1], [0], [0], [1], [0, 0, 1, 1], [], []>} : vector<80x32xbf16>, vector<32x32xbf16>, vector<80x32xf32> -> vector<80x32xf32>
    %c0_35 = arith.constant 0 : index
    %c0_36 = arith.constant 0 : index
    %39 = vector.load %arg14[%c0_35, %c0_36] : memref<1x32xf32, #tpu.memory_space<vmem>>, vector<1x32xf32>
    %40 = vector.broadcast %39 : vector<1x32xf32> to vector<80x32xf32>
    %41 = arith.addf %38, %40 : vector<80x32xf32>
    %cst_37 = arith.constant 0.000000e+00 : f32
    %42 = vector.broadcast %cst_37 : f32 to vector<80x32xf32>
    %43 = arith.maximumf %41, %42 : vector<80x32xf32>
    %44 = arith.truncf %43 : vector<80x32xf32> to vector<80x32xbf16>
    %c0_38 = arith.constant 0 : index
    %c0_39 = arith.constant 0 : index
    %45 = vector.load %arg15[%c0_38, %c0_39] : memref<32x6xbf16, #tpu.memory_space<vmem>>, vector<32x6xbf16>
    %cst_40 = arith.constant dense<0.000000e+00> : vector<80x6xf32>
    %46 = tpu.matmul %44, %45, %cst_40 {dimension_numbers = #tpu.dot_dimension_numbers<[1], [0], [0], [1], [0, 0, 1, 1], [], []>} : vector<80x32xbf16>, vector<32x6xbf16>, vector<80x6xf32> -> vector<80x6xf32>
    %c0_41 = arith.constant 0 : index
    %c0_42 = arith.constant 0 : index
    %47 = vector.load %arg16[%c0_41, %c0_42] : memref<1x6xf32, #tpu.memory_space<vmem>>, vector<1x6xf32>
    %48 = vector.broadcast %47 : vector<1x6xf32> to vector<80x6xf32>
    %49 = arith.addf %46, %48 : vector<80x6xf32>
    %50 = arith.addf %0, %49 : vector<80x6xf32>
    %c0_43 = arith.constant 0 : index
    %c0_44 = arith.constant 0 : index
    %51 = vector.load %arg17[%c0_43, %c0_44] : memref<80x6xf32, #tpu.memory_space<vmem>>, vector<80x6xf32>
    tpu.vector_store %arg17[%c0_43, %c0_44], %50 {strides = array<i32>} : memref<80x6xf32, #tpu.memory_space<vmem>>, vector<80x6xf32>,
    return
  }
  func.func @transform_0(%arg0: i32) -> (i32, i32) {
    %c0_i32 = arith.constant 0 : i32
    %c0_i32_0 = arith.constant 0 : i32
    return %arg0, %c0_i32 : i32, i32
  }
  func.func @transform_1(%arg0: i32) -> (i32, i32) {
    %c0_i32 = arith.constant 0 : i32
    %c0_i32_0 = arith.constant 0 : i32
    return %arg0, %c0_i32 : i32, i32
  }
  func.func @transform_2(%arg0: i32) -> (i32, i32) {
    %c0_i32 = arith.constant 0 : i32
    %c0_i32_0 = arith.constant 0 : i32
    return %arg0, %c0_i32 : i32, i32
  }
  func.func @transform_3(%arg0: i32) -> (i32, i32, i32) {
    %c0_i32 = arith.constant 0 : i32
    %c0_i32_0 = arith.constant 0 : i32
    %c0_i32_1 = arith.constant 0 : i32
    %c0_i32_2 = arith.constant 0 : i32
    return %c0_i32, %c0_i32_0, %c0_i32_1 : i32, i32, i32
  }
  func.func @transform_4(%arg0: i32) -> (i32, i32) {
    %c0_i32 = arith.constant 0 : i32
    %c0_i32_0 = arith.constant 0 : i32
    %c0_i32_1 = arith.constant 0 : i32
    return %c0_i32, %c0_i32_0 : i32, i32
  }
  func.func @transform_5(%arg0: i32) -> (i32, i32) {
    %c0_i32 = arith.constant 0 : i32
    %c0_i32_0 = arith.constant 0 : i32
    %c0_i32_1 = arith.constant 0 : i32
    return %c0_i32, %c0_i32_0 : i32, i32
  }
  func.func @transform_6(%arg0: i32) -> (i32, i32) {
    %c0_i32 = arith.constant 0 : i32
    %c0_i32_0 = arith.constant 0 : i32
    %c0_i32_1 = arith.constant 0 : i32
    return %c0_i32, %c0_i32_0 : i32, i32
  }
  func.func @transform_7(%arg0: i32) -> (i32, i32) {
    %c0_i32 = arith.constant 0 : i32
    %c0_i32_0 = arith.constant 0 : i32
    %c0_i32_1 = arith.constant 0 : i32
    return %c0_i32, %c0_i32_0 : i32, i32
  }
  func.func @transform_8(%arg0: i32) -> (i32, i32) {
    %c0_i32 = arith.constant 0 : i32
    %c0_i32_0 = arith.constant 0 : i32
    %c0_i32_1 = arith.constant 0 : i32
    return %c0_i32, %c0_i32_0 : i32, i32
  }
  func.func @transform_9(%arg0: i32) -> (i32, i32) {
    %c0_i32 = arith.constant 0 : i32
    %c0_i32_0 = arith.constant 0 : i32
    %c0_i32_1 = arith.constant 0 : i32
    return %c0_i32, %c0_i32_0 : i32, i32
  }
  func.func @transform_10(%arg0: i32) -> (i32, i32) {
    %c0_i32 = arith.constant 0 : i32
    %c0_i32_0 = arith.constant 0 : i32
    %c0_i32_1 = arith.constant 0 : i32
    return %c0_i32, %c0_i32_0 : i32, i32
  }
  func.func @transform_11(%arg0: i32) -> (i32, i32) {
    %c0_i32 = arith.constant 0 : i32
    %c0_i32_0 = arith.constant 0 : i32
    %c0_i32_1 = arith.constant 0 : i32
    return %c0_i32, %c0_i32_0 : i32, i32
  }
  func.func @transform_12(%arg0: i32) -> (i32, i32) {
    %c0_i32 = arith.constant 0 : i32
    %c0_i32_0 = arith.constant 0 : i32
    %c0_i32_1 = arith.constant 0 : i32
    return %c0_i32, %c0_i32_0 : i32, i32
  }
  func.func @transform_13(%arg0: i32) -> (i32, i32) {
    %c0_i32 = arith.constant 0 : i32
    %c0_i32_0 = arith.constant 0 : i32
    %c0_i32_1 = arith.constant 0 : i32
    return %c0_i32, %c0_i32_0 : i32, i32
  }
  func.func @transform_14(%arg0: i32) -> (i32, i32) {
    %c0_i32 = arith.constant 0 : i32
    %c0_i32_0 = arith.constant 0 : i32
    %c0_i32_1 = arith.constant 0 : i32
    return %c0_i32, %c0_i32_0 : i32, i32
  }
  func.func @transform_15(%arg0: i32) -> (i32, i32) {
    %c0_i32 = arith.constant 0 : i32
    %c0_i32_0 = arith.constant 0 : i32
    %c0_i32_1 = arith.constant 0 : i32
    return %c0_i32, %c0_i32_0 : i32, i32
  }
  func.func @transform_16(%arg0: i32) -> (i32, i32) {
    %c0_i32 = arith.constant 0 : i32
    %c0_i32_0 = arith.constant 0 : i32
    return %arg0, %c0_i32 : i32, i32
  }
}

</mosaic_0001>

<llo_original>
// kernel: tpu_custom_call.1
$region0: #{tpu_custom_call.1}
  #allocation0 [shape = 'u32[]', space=smem, size = 0x4, offset = 0x4, fixed_abs, tag = 'smem constant byte address 0x4 - core index']
  #allocation1 [shape = 'u32[144,128]{1,0:T(1,128)}', space=vmem, size = 0x12000, scoped, tag = 'internal scratch']
  %s0 = inlined_call_operand.vmem [shape: f32[80,6], index: 0, kind: input, shape index: {}]
  %s1 = inlined_call_operand.vmem [shape: bf16[320,12], index: 1, kind: input, shape index: {}]
  %s2 = inlined_call_operand.vmem [shape: f32[320,2], index: 2, kind: input, shape index: {}]
  %s3 = inlined_call_operand.vmem [shape: f32[1,80,320], index: 3, kind: input, shape index: {}]
  %s4 = inlined_call_operand.vmem [shape: f32[2,64], index: 4, kind: input, shape index: {}]
  %s5 = inlined_call_operand.vmem [shape: bf16[12,64], index: 5, kind: input, shape index: {}]
  %s6 = inlined_call_operand.vmem [shape: f32[1,64], index: 6, kind: input, shape index: {}]
  %s7 = inlined_call_operand.vmem [shape: bf16[64,64], index: 7, kind: input, shape index: {}]
  %s8 = inlined_call_operand.vmem [shape: f32[1,64], index: 8, kind: input, shape index: {}]
  %s9 = inlined_call_operand.vmem [shape: bf16[6,32], index: 9, kind: input, shape index: {}]
  %s10 = inlined_call_operand.vmem [shape: bf16[64,32], index: 10, kind: input, shape index: {}]
  %s11 = inlined_call_operand.vmem [shape: f32[1,32], index: 11, kind: input, shape index: {}]
  %s12 = inlined_call_operand.vmem [shape: bf16[32,32], index: 12, kind: input, shape index: {}]
  %s13 = inlined_call_operand.vmem [shape: f32[1,32], index: 13, kind: input, shape index: {}]
  %s14 = inlined_call_operand.vmem [shape: bf16[32,6], index: 14, kind: input, shape index: {}]
  %s15 = inlined_call_operand.vmem [shape: f32[1,6], index: 15, kind: input, shape index: {}]
  %s16 = inlined_call_operand.vmem [shape: f32[80,6], index: 16, kind: output, shape index: {}]
  %s17 = sld [smem:[#allocation0]]
  $region74: #{tpu_custom_call.1} parent=0
    _
  %s19 = ssub.s32 1, %s17
  %s20 = scalar_select 0, %s19, %s17
  // Predicated region
  $region2: #{tpu_custom_call.1} parent=0 // pred_check
    _
  $region3: #{tpu_custom_call.1} parent=0 // pred_check_branch
    %22 = sbr.rel (0) target = $region5
  $region4: #{tpu_custom_call.1} parent=0 // pred_region
    _
  $region5: #{tpu_custom_call.1} parent=0 // pred_fallthru
    _
  // Predicated region
  $region6: #{tpu_custom_call.1} parent=0 // pred_check
    _
  $region7: #{tpu_custom_call.1} parent=0 // pred_check_branch
    %24 = sbr.rel (0) target = $region9
  $region8: #{tpu_custom_call.1} parent=0 // pred_region
    _
  $region9: #{tpu_custom_call.1} parent=0 // pred_fallthru
    _
  // Predicated region
  $region10: #{tpu_custom_call.1} parent=0 // pred_check
    _
  $region11: #{tpu_custom_call.1} parent=0 // pred_check_branch
    %26 = sbr.rel (0) target = $region13
  $region12: #{tpu_custom_call.1} parent=0 // pred_region
    _
  $region13: #{tpu_custom_call.1} parent=0 // pred_fallthru
    _
  // Predicated region
  $region14: #{tpu_custom_call.1} parent=0 // pred_check
    _
  $region15: #{tpu_custom_call.1} parent=0 // pred_check_branch
    %28 = sbr.rel (0) target = $region17
  $region16: #{tpu_custom_call.1} parent=0 // pred_region
    _
  $region17: #{tpu_custom_call.1} parent=0 // pred_fallthru
    _
  // Predicated region
  $region18: #{tpu_custom_call.1} parent=0 // pred_check
    _
  $region19: #{tpu_custom_call.1} parent=0 // pred_check_branch
    %30 = sbr.rel (0) target = $region21
  $region20: #{tpu_custom_call.1} parent=0 // pred_region
    _
  $region21: #{tpu_custom_call.1} parent=0 // pred_fallthru
    _
  // Predicated region
  $region22: #{tpu_custom_call.1} parent=0 // pred_check
    _
  $region23: #{tpu_custom_call.1} parent=0 // pred_check_branch
    %32 = sbr.rel (0) target = $region25
  $region24: #{tpu_custom_call.1} parent=0 // pred_region
    _
  $region25: #{tpu_custom_call.1} parent=0 // pred_fallthru
    _
  // Predicated region
  $region26: #{tpu_custom_call.1} parent=0 // pred_check
    _
  $region27: #{tpu_custom_call.1} parent=0 // pred_check_branch
    %34 = sbr.rel (0) target = $region29
  $region28: #{tpu_custom_call.1} parent=0 // pred_region
    _
  $region29: #{tpu_custom_call.1} parent=0 // pred_fallthru
    _
  // Predicated region
  $region30: #{tpu_custom_call.1} parent=0 // pred_check
    _
  $region31: #{tpu_custom_call.1} parent=0 // pred_check_branch
    %36 = sbr.rel (0) target = $region33
  $region32: #{tpu_custom_call.1} parent=0 // pred_region
    _
  $region33: #{tpu_custom_call.1} parent=0 // pred_fallthru
    _
  // Predicated region
  $region34: #{tpu_custom_call.1} parent=0 // pred_check
    _
  $region35: #{tpu_custom_call.1} parent=0 // pred_check_branch
    %38 = sbr.rel (0) target = $region37
  $region36: #{tpu_custom_call.1} parent=0 // pred_region
    _
  $region37: #{tpu_custom_call.1} parent=0 // pred_fallthru
    _
  // Predicated region
  $region38: #{tpu_custom_call.1} parent=0 // pred_check
    _
  $region39: #{tpu_custom_call.1} parent=0 // pred_check_branch
    %40 = sbr.rel (0) target = $region41
  $region40: #{tpu_custom_call.1} parent=0 // pred_region
    _
  $region41: #{tpu_custom_call.1} parent=0 // pred_fallthru
    _
  // Predicated region
  $region42: #{tpu_custom_call.1} parent=0 // pred_check
    _
  $region43: #{tpu_custom_call.1} parent=0 // pred_check_branch
    %42 = sbr.rel (0) target = $region45
  $region44: #{tpu_custom_call.1} parent=0 // pred_region
    _
  $region45: #{tpu_custom_call.1} parent=0 // pred_fallthru
    _
  // Predicated region
  $region46: #{tpu_custom_call.1} parent=0 // pred_check
    _
  $region47: #{tpu_custom_call.1} parent=0 // pred_check_branch
    %44 = sbr.rel (0) target = $region49
  $region48: #{tpu_custom_call.1} parent=0 // pred_region
    _
  $region49: #{tpu_custom_call.1} parent=0 // pred_fallthru
    _
  // Predicated region
  $region50: #{tpu_custom_call.1} parent=0 // pred_check
    _
  $region51: #{tpu_custom_call.1} parent=0 // pred_check_branch
    %46 = sbr.rel (0) target = $region53
  $region52: #{tpu_custom_call.1} parent=0 // pred_region
    _
  $region53: #{tpu_custom_call.1} parent=0 // pred_fallthru
    _
  // Predicated region
  $region54: #{tpu_custom_call.1} parent=0 // pred_check
    _
  $region55: #{tpu_custom_call.1} parent=0 // pred_check_branch
    %48 = sbr.rel (0) target = $region57
  $region56: #{tpu_custom_call.1} parent=0 // pred_region
    _
  $region57: #{tpu_custom_call.1} parent=0 // pred_fallthru
    _
  // Predicated region
  $region58: #{tpu_custom_call.1} parent=0 // pred_check
    _
  $region59: #{tpu_custom_call.1} parent=0 // pred_check_branch
    %50 = sbr.rel (0) target = $region61
  $region60: #{tpu_custom_call.1} parent=0 // pred_region
    _
  $region61: #{tpu_custom_call.1} parent=0 // pred_fallthru
    _
  // Predicated region
  $region62: #{tpu_custom_call.1} parent=0 // pred_check
    _
  $region63: #{tpu_custom_call.1} parent=0 // pred_check_branch
    %52 = sbr.rel (0) target = $region65
  $region64: #{tpu_custom_call.1} parent=0 // pred_region
    _
  $region65: #{tpu_custom_call.1} parent=0 // pred_fallthru
    _
  %v54 = vld [vmem:[%s0] sm:$0xff]
  %v55 = vld [vmem:[%s0 + $0x8] sm:$0xff]
  %v56 = vld [vmem:[%s0 + $0x10] sm:$0xff]
  %v57 = vld [vmem:[%s0 + $0x18] sm:$0xff]
  %v58 = vld [vmem:[%s0 + $0x20] sm:$0xff]
  %v59 = vld [vmem:[%s0 + $0x28] sm:$0xff]
  %v60 = vld [vmem:[%s0 + $0x30] sm:$0xff]
  %v61 = vld [vmem:[%s0 + $0x38] sm:$0xff]
  %v62 = vld [vmem:[%s0 + $0x40] sm:$0xff]
  %v63 = vld [vmem:[%s0 + $0x48] sm:$0xff]
  %v64 = vld [vmem:[%s1] sm:$0xf]
  %v65 = vld [vmem:[%s1 + $0x4] sm:$0xf]
  %v66 = vld [vmem:[%s1 + $0x8] sm:$0xf]
  %v67 = vld [vmem:[%s1 + $0xc] sm:$0xf]
  %v68 = vld [vmem:[%s1 + $0x10] sm:$0xf]
  %v69 = vld [vmem:[%s1 + $0x14] sm:$0xf]
  %v70 = vld [vmem:[%s1 + $0x18] sm:$0xf]
  %v71 = vld [vmem:[%s1 + $0x1c] sm:$0xf]
  %v72 = vld [vmem:[%s1 + $0x20] sm:$0xf]
  %v73 = vld [vmem:[%s1 + $0x24] sm:$0xf]
  %v74 = vld [vmem:[%s1 + $0x28] sm:$0xf]
  %v75 = vld [vmem:[%s1 + $0x2c] sm:$0xf]
  %v76 = vld [vmem:[%s1 + $0x30] sm:$0xf]
  %v77 = vld [vmem:[%s1 + $0x34] sm:$0xf]
  %v78 = vld [vmem:[%s1 + $0x38] sm:$0xf]
  %v79 = vld [vmem:[%s1 + $0x3c] sm:$0xf]
  %v80 = vld [vmem:[%s1 + $0x40] sm:$0xf]
  %v81 = vld [vmem:[%s1 + $0x44] sm:$0xf]
  %v82 = vld [vmem:[%s1 + $0x48] sm:$0xf]
  %v83 = vld [vmem:[%s1 + $0x4c] sm:$0xf]
  %v84 = vld [vmem:[%s1 + $0x50] sm:$0xf]
  %v85 = vld [vmem:[%s1 + $0x54] sm:$0xf]
  %v86 = vld [vmem:[%s1 + $0x58] sm:$0xf]
  %v87 = vld [vmem:[%s1 + $0x5c] sm:$0xf]
  %v88 = vld [vmem:[%s1 + $0x60] sm:$0xf]
  %v89 = vld [vmem:[%s1 + $0x64] sm:$0xf]
  %v90 = vld [vmem:[%s1 + $0x68] sm:$0xf]
  %v91 = vld [vmem:[%s1 + $0x6c] sm:$0xf]
  %v92 = vld [vmem:[%s1 + $0x70] sm:$0xf]
  %v93 = vld [vmem:[%s1 + $0x74] sm:$0xf]
  %v94 = vld [vmem:[%s1 + $0x78] sm:$0xf]
  %v95 = vld [vmem:[%s1 + $0x7c] sm:$0xf]
  %v96 = vld [vmem:[%s1 + $0x80] sm:$0xf]
  %v97 = vld [vmem:[%s1 + $0x84] sm:$0xf]
  %v98 = vld [vmem:[%s1 + $0x88] sm:$0xf]
  %v99 = vld [vmem:[%s1 + $0x8c] sm:$0xf]
  %v100 = vld [vmem:[%s1 + $0x90] sm:$0xf]
  %v101 = vld [vmem:[%s1 + $0x94] sm:$0xf]
  %v102 = vld [vmem:[%s1 + $0x98] sm:$0xf]
  %v103 = vld [vmem:[%s1 + $0x9c] sm:$0xf]
  %v104 = vld [vmem:[%s3] sm:$0xff]
  %v105 = vld [vmem:[%s3 + $0x8] sm:$0xff]
  %v106 = vld [vmem:[%s3 + $0x10] sm:$0xff]
  %v107 = vld [vmem:[%s3 + $0x18] sm:$0xff]
  %v108 = vld [vmem:[%s3 + $0x20] sm:$0xff]
  %v109 = vld [vmem:[%s3 + $0x28] sm:$0xff]
  %v110 = vld [vmem:[%s3 + $0x30] sm:$0xff]
  %v111 = vld [vmem:[%s3 + $0x38] sm:$0xff]
  %v112 = vld [vmem:[%s3 + $0x40] sm:$0xff]
  %v113 = vld [vmem:[%s3 + $0x48] sm:$0xff]
  %v114 = vld [vmem:[%s3 + $0x50] sm:$0xff]
  %v115 = vld [vmem:[%s3 + $0x58] sm:$0xff]
  %v116 = vld [vmem:[%s3 + $0x60] sm:$0xff]
  %v117 = vld [vmem:[%s3 + $0x68] sm:$0xff]
  %v118 = vld [vmem:[%s3 + $0x70] sm:$0xff]
  %v119 = vld [vmem:[%s3 + $0x78] sm:$0xff]
  %v120 = vld [vmem:[%s3 + $0x80] sm:$0xff]
  %v121 = vld [vmem:[%s3 + $0x88] sm:$0xff]
  %v122 = vld [vmem:[%s3 + $0x90] sm:$0xff]
  %v123 = vld [vmem:[%s3 + $0x98] sm:$0xff]
  %v124 = vld [vmem:[%s3 + $0xa0] sm:$0xff]
  %v125 = vld [vmem:[%s3 + $0xa8] sm:$0xff]
  %v126 = vld [vmem:[%s3 + $0xb0] sm:$0xff]
  %v127 = vld [vmem:[%s3 + $0xb8] sm:$0xff]
  %v128 = vld [vmem:[%s3 + $0xc0] sm:$0xff]
  %v129 = vld [vmem:[%s3 + $0xc8] sm:$0xff]
  %v130 = vld [vmem:[%s3 + $0xd0] sm:$0xff]
  %v131 = vld [vmem:[%s3 + $0xd8] sm:$0xff]
  %v132 = vld [vmem:[%s3 + $0xe0] sm:$0xff]
  %v133 = vld [vmem:[%s3 + $0xe8] sm:$0xff]
  %v134 = vld [vmem:[%s5] sm:$0xf]
  %v135 = vld [vmem:[%s5 + $0x4] sm:$0x3]
  %v136 = vld [vmem:[%s6] sm:$0x1]
  %v138 = vlaneseq
  %v139 = vshrl.u32 %v138, 7
  %v140 = vsub.s32 0, %v139
  %v141 = vrot.slane %v136, %v140
  %v183 = vunpack.c.l.b16 %v64
  %v184 = vunpack.c.l.b16 %v65
  %v185 = vunpack.c.l.b16 %v66
  %v186 = vunpack.c.l.b16 %v67
  %v187 = vunpack.c.l.b16 %v68
  %v188 = vunpack.c.l.b16 %v69
  %v189 = vunpack.c.l.b16 %v70
  %v190 = vunpack.c.l.b16 %v71
  %v191 = vunpack.c.l.b16 %v72
  %v192 = vunpack.c.l.b16 %v73
  %v193 = vunpack.c.l.b16 %v74
  %v194 = vunpack.c.l.b16 %v75
  %v195 = vunpack.c.l.b16 %v76
  %v196 = vunpack.c.l.b16 %v77
  %v197 = vunpack.c.l.b16 %v78
  %v198 = vunpack.c.l.b16 %v79
  %v199 = vunpack.c.l.b16 %v80
  %v200 = vunpack.c.l.b16 %v81
  %v201 = vunpack.c.l.b16 %v82
  %v202 = vunpack.c.l.b16 %v83
  %v203 = vunpack.c.l.b16 %v84
  %v204 = vunpack.c.l.b16 %v85
  %v205 = vunpack.c.l.b16 %v86
  %v206 = vunpack.c.l.b16 %v87
  %v207 = vunpack.c.l.b16 %v88
  %v208 = vunpack.c.l.b16 %v89
  %v209 = vunpack.c.l.b16 %v90
  %v210 = vunpack.c.l.b16 %v91
  %v211 = vunpack.c.l.b16 %v92
  %v212 = vunpack.c.l.b16 %v93
  %v213 = vunpack.c.l.b16 %v94
  %v214 = vunpack.c.l.b16 %v95
  %v215 = vunpack.c.l.b16 %v96
  %v216 = vunpack.c.l.b16 %v97
  %v217 = vunpack.c.l.b16 %v98
  %v218 = vunpack.c.l.b16 %v99
  %v219 = vunpack.c.l.b16 %v100
  %v220 = vunpack.c.l.b16 %v101
  %v221 = vunpack.c.l.b16 %v102
  %v222 = vunpack.c.l.b16 %v103
  %v223 = vpack.c.b16 %v184, %v183
  %v224 = vpack.c.b16 %v186, %v185
  %v225 = vpack.c.b16 %v188, %v187
  %v226 = vpack.c.b16 %v190, %v189
  %v227 = vpack.c.b16 %v192, %v191
  %v228 = vpack.c.b16 %v194, %v193
  %v229 = vpack.c.b16 %v196, %v195
  %v230 = vpack.c.b16 %v198, %v197
  %v231 = vpack.c.b16 %v200, %v199
  %v232 = vpack.c.b16 %v202, %v201
  %v233 = vpack.c.b16 %v204, %v203
  %v234 = vpack.c.b16 %v206, %v205
  %v235 = vpack.c.b16 %v208, %v207
  %v236 = vpack.c.b16 %v210, %v209
  %v237 = vpack.c.b16 %v212, %v211
  %v238 = vpack.c.b16 %v214, %v213
  %v239 = vpack.c.b16 %v216, %v215
  %v240 = vpack.c.b16 %v218, %v217
  %v241 = vpack.c.b16 %v220, %v219
  %v242 = vpack.c.b16 %v222, %v221
  %v245 = vunpack.c.l.b16 %v134
  %v246 = vunpack.c.l.b16 %v135
  %v247 = vpack.c.b16 %v246, %v245
  %vm248 = vcmask 97280
  %v250 = vsel %vm248, %v223, 0
  %v253 = vsel %vm248, %v224, 0
  %v256 = vsel %vm248, %v225, 0
  %v259 = vsel %vm248, %v226, 0
  %v262 = vsel %vm248, %v227, 0
  %v265 = vsel %vm248, %v228, 0
  %v268 = vsel %vm248, %v229, 0
  %v271 = vsel %vm248, %v230, 0
  %v274 = vsel %vm248, %v231, 0
  %v277 = vsel %vm248, %v232, 0
  %v280 = vsel %vm248, %v233, 0
  %v283 = vsel %vm248, %v234, 0
  %v286 = vsel %vm248, %v235, 0
  %v289 = vsel %vm248, %v236, 0
  %v292 = vsel %vm248, %v237, 0
  %v295 = vsel %vm248, %v238, 0
  %v298 = vsel %vm248, %v239, 0
  %v301 = vsel %vm248, %v240, 0
  %v304 = vsel %vm248, %v241, 0
  %v307 = vsel %vm248, %v242, 0
  %vm309 = vcmask 1045504
  %v311 = vsel %vm309, %v247, 0
  %313 = vmatprep.subr.bf16.mxu0 0
  %314 = vmatpush1.bf16.msra.mxu0 %v311
  %315 = vmatprep.subr.bf16.mxu0 0
  %316 = vmatpush1.bf16.msra.mxu0 0
  %317 = vmatprep.subr.bf16.mxu0 0
  %318 = vmatpush1.bf16.msra.mxu0 0
  %319 = vmatprep.subr.bf16.mxu0 0
  %320 = vmatpush1.bf16.msra.mxu0 0
  %321 = vmatprep.subr.bf16.mxu0 0
  %322 = vmatpush1.bf16.msra.mxu0 0
  %323 = vmatprep.subr.bf16.mxu0 0
  %324 = vmatpush1.bf16.msra.mxu0 0
  %325 = vmatprep.subr.bf16.mxu0 0
  %326 = vmatpush1.bf16.msra.mxu0 0
  %327 = vmatprep.subr.bf16.mxu0 0
  %328 = vmatpush1.bf16.msra.mxu0 0
  %329 = vmatprep.subr.bf16.mxu0 0
  %330 = vmatpush1.bf16.msra.mxu0 0
  %331 = vmatprep.subr.bf16.mxu0 0
  %332 = vmatpush1.bf16.msra.mxu0 0
  %333 = vmatprep.subr.bf16.mxu0 0
  %334 = vmatpush1.bf16.msra.mxu0 0
  %335 = vmatprep.subr.bf16.mxu0 0
  %336 = vmatpush1.bf16.msra.mxu0 0
  %337 = vmatprep.subr.bf16.mxu0 0
  %338 = vmatpush1.bf16.msra.mxu0 0
  %339 = vmatprep.subr.bf16.mxu0 0
  %340 = vmatpush1.bf16.msra.mxu0 0
  %341 = vmatprep.subr.bf16.mxu0 0
  %342 = vmatpush1.bf16.msra.mxu0 0
  %343 = vmatprep.subr.bf16.mxu0 0
  %344 = vmatpush1.bf16.msra.mxu0 0
  %345 = vmatprep.mubr.bf16.mxu0 0
  %346 = vmatmul.mubr.bf16.gmra.mrb[0].mxu0 %v250
  %v347 = vpop.f32.mrb[0].mxu0
  %v348 = vadd.f32 %v141, %v347
  %v349 = vpop.f32.mrb[0].mxu0
  %v350 = vpop.f32.mrb[0].mxu0
  %v351 = vadd.f32 %v141, %v350
  %v352 = vpop.f32.mrb[0].mxu0
  %353 = vmatprep.mubr.bf16.mxu0 0
  %354 = vmatmul.mubr.bf16.gmra.mrb[0].mxu0 %v253
  %v355 = vpop.f32.mrb[0].mxu0
  %v356 = vadd.f32 %v141, %v355
  %v357 = vpop.f32.mrb[0].mxu0
  %v358 = vpop.f32.mrb[0].mxu0
  %v359 = vadd.f32 %v141, %v358
  %v360 = vpop.f32.mrb[0].mxu0
  %361 = vmatprep.mubr.bf16.mxu0 0
  %362 = vmatmul.mubr.bf16.gmra.mrb[0].mxu0 %v256
  %v363 = vpop.f32.mrb[0].mxu0
  %v364 = vadd.f32 %v141, %v363
  %v365 = vpop.f32.mrb[0].mxu0
  %v366 = vpop.f32.mrb[0].mxu0
  %v367 = vadd.f32 %v141, %v366
  %v368 = vpop.f32.mrb[0].mxu0
  %369 = vmatprep.mubr.bf16.mxu0 0
  %370 = vmatmul.mubr.bf16.gmra.mrb[0].mxu0 %v259
  %v371 = vpop.f32.mrb[0].mxu0
  %v372 = vadd.f32 %v141, %v371
  %v373 = vpop.f32.mrb[0].mxu0
  %v374 = vpop.f32.mrb[0].mxu0
  %v375 = vadd.f32 %v141, %v374
  %v376 = vpop.f32.mrb[0].mxu0
  %377 = vmatprep.mubr.bf16.mxu0 0
  %378 = vmatmul.mubr.bf16.gmra.mrb[0].mxu0 %v262
  %v379 = vpop.f32.mrb[0].mxu0
  %v380 = vadd.f32 %v141, %v379
  %v381 = vpop.f32.mrb[0].mxu0
  %v382 = vpop.f32.mrb[0].mxu0
  %v383 = vadd.f32 %v141, %v382
  %v384 = vpop.f32.mrb[0].mxu0
  %385 = vmatprep.mubr.bf16.mxu0 0
  %386 = vmatmul.mubr.bf16.gmra.mrb[0].mxu0 %v265
  %v387 = vpop.f32.mrb[0].mxu0
  %v388 = vadd.f32 %v141, %v387
  %v389 = vpop.f32.mrb[0].mxu0
  %v390 = vpop.f32.mrb[0].mxu0
  %v391 = vadd.f32 %v141, %v390
  %v392 = vpop.f32.mrb[0].mxu0
  %393 = vmatprep.mubr.bf16.mxu0 0
  %394 = vmatmul.mubr.bf16.gmra.mrb[0].mxu0 %v268
  %v395 = vpop.f32.mrb[0].mxu0
  %v396 = vadd.f32 %v141, %v395
  %v397 = vpop.f32.mrb[0].mxu0
  %v398 = vpop.f32.mrb[0].mxu0
  %v399 = vadd.f32 %v141, %v398
  %v400 = vpop.f32.mrb[0].mxu0
  %401 = vmatprep.mubr.bf16.mxu0 0
  %402 = vmatmul.mubr.bf16.gmra.mrb[0].mxu0 %v271
  %v403 = vpop.f32.mrb[0].mxu0
  %v404 = vadd.f32 %v141, %v403
  %v405 = vpop.f32.mrb[0].mxu0
  %v406 = vpop.f32.mrb[0].mxu0
  %v407 = vadd.f32 %v141, %v406
  %v408 = vpop.f32.mrb[0].mxu0
  %409 = vmatprep.mubr.bf16.mxu0 0
  %410 = vmatmul.mubr.bf16.gmra.mrb[0].mxu0 %v274
  %v411 = vpop.f32.mrb[0].mxu0
  %v412 = vadd.f32 %v141, %v411
  %v413 = vpop.f32.mrb[0].mxu0
  %v414 = vpop.f32.mrb[0].mxu0
  %v415 = vadd.f32 %v141, %v414
  %v416 = vpop.f32.mrb[0].mxu0
  %417 = vmatprep.mubr.bf16.mxu0 0
  %418 = vmatmul.mubr.bf16.gmra.mrb[0].mxu0 %v277
  %v419 = vpop.f32.mrb[0].mxu0
  %v420 = vadd.f32 %v141, %v419
  %v421 = vpop.f32.mrb[0].mxu0
  %v422 = vpop.f32.mrb[0].mxu0
  %v423 = vadd.f32 %v141, %v422
  %v424 = vpop.f32.mrb[0].mxu0
  %425 = vmatprep.mubr.bf16.mxu0 0
  %426 = vmatmul.mubr.bf16.gmra.mrb[0].mxu0 %v280
  %v427 = vpop.f32.mrb[0].mxu0
  %v428 = vadd.f32 %v141, %v427
  %v429 = vpop.f32.mrb[0].mxu0
  %v430 = vpop.f32.mrb[0].mxu0
  %v431 = vadd.f32 %v141, %v430
  %v432 = vpop.f32.mrb[0].mxu0
  %433 = vmatprep.mubr.bf16.mxu0 0
  %434 = vmatmul.mubr.bf16.gmra.mrb[0].mxu0 %v283
  %v435 = vpop.f32.mrb[0].mxu0
  %v436 = vadd.f32 %v141, %v435
  %v437 = vpop.f32.mrb[0].mxu0
  %v438 = vpop.f32.mrb[0].mxu0
  %v439 = vadd.f32 %v141, %v438
  %v440 = vpop.f32.mrb[0].mxu0
  %441 = vmatprep.mubr.bf16.mxu0 0
  %442 = vmatmul.mubr.bf16.gmra.mrb[0].mxu0 %v286
  %v443 = vpop.f32.mrb[0].mxu0
  %v444 = vadd.f32 %v141, %v443
  %v445 = vpop.f32.mrb[0].mxu0
  %v446 = vpop.f32.mrb[0].mxu0
  %v447 = vadd.f32 %v141, %v446
  %v448 = vpop.f32.mrb[0].mxu0
  %449 = vmatprep.mubr.bf16.mxu0 0
  %450 = vmatmul.mubr.bf16.gmra.mrb[0].mxu0 %v289
  %v451 = vpop.f32.mrb[0].mxu0
  %v452 = vadd.f32 %v141, %v451
  %v453 = vpop.f32.mrb[0].mxu0
  %v454 = vpop.f32.mrb[0].mxu0
  %v455 = vadd.f32 %v141, %v454
  %v456 = vpop.f32.mrb[0].mxu0
  %457 = vmatprep.mubr.bf16.mxu0 0
  %458 = vmatmul.mubr.bf16.gmra.mrb[0].mxu0 %v292
  %v459 = vpop.f32.mrb[0].mxu0
  %v460 = vadd.f32 %v141, %v459
  %v461 = vpop.f32.mrb[0].mxu0
  %v462 = vpop.f32.mrb[0].mxu0
  %v463 = vadd.f32 %v141, %v462
  %v464 = vpop.f32.mrb[0].mxu0
  %465 = vmatprep.mubr.bf16.mxu0 0
  %466 = vmatmul.mubr.bf16.gmra.mrb[0].mxu0 %v295
  %v467 = vpop.f32.mrb[0].mxu0
  %v468 = vadd.f32 %v141, %v467
  %v469 = vpop.f32.mrb[0].mxu0
  %v470 = vpop.f32.mrb[0].mxu0
  %v471 = vadd.f32 %v141, %v470
  %v472 = vpop.f32.mrb[0].mxu0
  %473 = vmatprep.mubr.bf16.mxu0 0
  %474 = vmatmul.mubr.bf16.gmra.mrb[0].mxu0 %v298
  %v475 = vpop.f32.mrb[0].mxu0
  %v476 = vadd.f32 %v141, %v475
  %v477 = vpop.f32.mrb[0].mxu0
  %v478 = vpop.f32.mrb[0].mxu0
  %v479 = vadd.f32 %v141, %v478
  %v480 = vpop.f32.mrb[0].mxu0
  %481 = vmatprep.mubr.bf16.mxu0 0
  %482 = vmatmul.mubr.bf16.gmra.mrb[0].mxu0 %v301
  %v483 = vpop.f32.mrb[0].mxu0
  %v484 = vadd.f32 %v141, %v483
  %v485 = vpop.f32.mrb[0].mxu0
  %v486 = vpop.f32.mrb[0].mxu0
  %v487 = vadd.f32 %v141, %v486
  %v488 = vpop.f32.mrb[0].mxu0
  %489 = vmatprep.mubr.bf16.mxu0 0
  %490 = vmatmul.mubr.bf16.gmra.mrb[0].mxu0 %v304
  %v491 = vpop.f32.mrb[0].mxu0
  %v492 = vadd.f32 %v141, %v491
  %v493 = vpop.f32.mrb[0].mxu0
  %v494 = vpop.f32.mrb[0].mxu0
  %v495 = vadd.f32 %v141, %v494
  %v496 = vpop.f32.mrb[0].mxu0
  %497 = vmatprep.mubr.bf16.mxu0 0
  %498 = vmatmul.mubr.bf16.gmra.mrb[0].mxu0 %v307
  %v499 = vpop.f32.mrb[0].mxu0
  %v500 = vadd.f32 %v141, %v499
  %v501 = vpop.f32.mrb[0].mxu0
  %v502 = vpop.f32.mrb[0].mxu0
  %v503 = vadd.f32 %v141, %v502
  %v504 = vpop.f32.mrb[0].mxu0
  %505 = vdwg.mxu0
  %v506 = vmax.f32 %v348, 0.0
  %v507 = vmax.f32 %v351, 0.0
  %v508 = vmax.f32 %v356, 0.0
  %v509 = vmax.f32 %v359, 0.0
  %v510 = vmax.f32 %v364, 0.0
  %v511 = vmax.f32 %v367, 0.0
  %v512 = vmax.f32 %v372, 0.0
  %v513 = vmax.f32 %v375, 0.0
  %v514 = vmax.f32 %v380, 0.0
  %v515 = vmax.f32 %v383, 0.0
  %v516 = vmax.f32 %v388, 0.0
  %v517 = vmax.f32 %v391, 0.0
  %v518 = vmax.f32 %v396, 0.0
  %v519 = vmax.f32 %v399, 0.0
  %v520 = vmax.f32 %v404, 0.0
  %v521 = vmax.f32 %v407, 0.0
  %v522 = vmax.f32 %v412, 0.0
  %v523 = vmax.f32 %v415, 0.0
  %v524 = vmax.f32 %v420, 0.0
  %v525 = vmax.f32 %v423, 0.0
  %v526 = vmax.f32 %v428, 0.0
  %v527 = vmax.f32 %v431, 0.0
  %v528 = vmax.f32 %v436, 0.0
  %v529 = vmax.f32 %v439, 0.0
  %v530 = vmax.f32 %v444, 0.0
  %v531 = vmax.f32 %v447, 0.0
  %v532 = vmax.f32 %v452, 0.0
  %v533 = vmax.f32 %v455, 0.0
  %v534 = vmax.f32 %v460, 0.0
  %v535 = vmax.f32 %v463, 0.0
  %v536 = vmax.f32 %v468, 0.0
  %v537 = vmax.f32 %v471, 0.0
  %v538 = vmax.f32 %v476, 0.0
  %v539 = vmax.f32 %v479, 0.0
  %v540 = vmax.f32 %v484, 0.0
  %v541 = vmax.f32 %v487, 0.0
  %v542 = vmax.f32 %v492, 0.0
  %v543 = vmax.f32 %v495, 0.0
  %v544 = vmax.f32 %v500, 0.0
  %v545 = vmax.f32 %v503, 0.0
  %v546 = vpack.c.bf16 %v507, %v506
  %v547 = vpack.c.bf16 %v509, %v508
  %v548 = vpack.c.bf16 %v511, %v510
  %v549 = vpack.c.bf16 %v513, %v512
  %v550 = vpack.c.bf16 %v515, %v514
  %v551 = vpack.c.bf16 %v517, %v516
  %v552 = vpack.c.bf16 %v519, %v518
  %v553 = vpack.c.bf16 %v521, %v520
  %v554 = vpack.c.bf16 %v523, %v522
  %v555 = vpack.c.bf16 %v525, %v524
  %v556 = vpack.c.bf16 %v527, %v526
  %v557 = vpack.c.bf16 %v529, %v528
  %v558 = vpack.c.bf16 %v531, %v530
  %v559 = vpack.c.bf16 %v533, %v532
  %v560 = vpack.c.bf16 %v535, %v534
  %v561 = vpack.c.bf16 %v537, %v536
  %v562 = vpack.c.bf16 %v539, %v538
  %v563 = vpack.c.bf16 %v541, %v540
  %v564 = vpack.c.bf16 %v543, %v542
  %v565 = vpack.c.bf16 %v545, %v544
  %v566 = vld [vmem:[%s7] sm:$0xf]
  %v567 = vld [vmem:[%s7 + $0x4] sm:$0xf]
  %v568 = vld [vmem:[%s7 + $0x8] sm:$0xf]
  %v569 = vld [vmem:[%s7 + $0xc] sm:$0xf]
  %v570 = vld [vmem:[%s7 + $0x10] sm:$0xf]
  %v571 = vld [vmem:[%s7 + $0x14] sm:$0xf]
  %v572 = vld [vmem:[%s7 + $0x18] sm:$0xf]
  %v573 = vld [vmem:[%s7 + $0x1c] sm:$0xf]
  %v574 = vld [vmem:[%s8] sm:$0x1]
  %v576 = vlaneseq
  %v577 = vshrl.u32 %v576, 7
  %v578 = vsub.s32 0, %v577
  %v579 = vrot.slane %v574, %v578
  %v589 = vunpack.c.l.b16 %v566
  %v590 = vunpack.c.l.b16 %v567
  %v591 = vunpack.c.l.b16 %v568
  %v592 = vunpack.c.l.b16 %v569
  %v593 = vunpack.c.l.b16 %v570
  %v594 = vunpack.c.l.b16 %v571
  %v595 = vunpack.c.l.b16 %v572
  %v596 = vunpack.c.l.b16 %v573
  %v597 = vpack.c.b16 %v590, %v589
  %v598 = vpack.c.b16 %v592, %v591
  %v599 = vpack.c.b16 %v594, %v593
  %v600 = vpack.c.b16 %v596, %v595
  %vm605 = vcmask 523264
  %v607 = vsel %vm605, %v546, 0
  %v610 = vsel %vm605, %v547, 0
  %v613 = vsel %vm605, %v548, 0
  %v616 = vsel %vm605, %v549, 0
  %v619 = vsel %vm605, %v550, 0
  %v622 = vsel %vm605, %v551, 0
  %v625 = vsel %vm605, %v552, 0
  %v628 = vsel %vm605, %v553, 0
  %v631 = vsel %vm605, %v554, 0
  %v634 = vsel %vm605, %v555, 0
  %v637 = vsel %vm605, %v556, 0
  %v640 = vsel %vm605, %v557, 0
  %v643 = vsel %vm605, %v558, 0
  %v646 = vsel %vm605, %v559, 0
  %v649 = vsel %vm605, %v560, 0
  %v652 = vsel %vm605, %v561, 0
  %v655 = vsel %vm605, %v562, 0
  %v658 = vsel %vm605, %v563, 0
  %v661 = vsel %vm605, %v564, 0
  %v664 = vsel %vm605, %v565, 0
  %666 = vmatprep.subr.bf16.mxu0 0
  %667 = vmatpush1.bf16.msra.mxu0 %v597
  %668 = vmatprep.subr.bf16.mxu0 0
  %669 = vmatpush1.bf16.msra.mxu0 %v598
  %670 = vmatprep.subr.bf16.mxu0 0
  %671 = vmatpush1.bf16.msra.mxu0 %v599
  %672 = vmatprep.subr.bf16.mxu0 0
  %673 = vmatpush1.bf16.msra.mxu0 %v600
  %674 = vmatprep.subr.bf16.mxu0 0
  %675 = vmatpush1.bf16.msra.mxu0 0
  %676 = vmatprep.subr.bf16.mxu0 0
  %677 = vmatpush1.bf16.msra.mxu0 0
  %678 = vmatprep.subr.bf16.mxu0 0
  %679 = vmatpush1.bf16.msra.mxu0 0
  %680 = vmatprep.subr.bf16.mxu0 0
  %681 = vmatpush1.bf16.msra.mxu0 0
  %682 = vmatprep.subr.bf16.mxu0 0
  %683 = vmatpush1.bf16.msra.mxu0 0
  %684 = vmatprep.subr.bf16.mxu0 0
  %685 = vmatpush1.bf16.msra.mxu0 0
  %686 = vmatprep.subr.bf16.mxu0 0
  %687 = vmatpush1.bf16.msra.mxu0 0
  %688 = vmatprep.subr.bf16.mxu0 0
  %689 = vmatpush1.bf16.msra.mxu0 0
  %690 = vmatprep.subr.bf16.mxu0 0
  %691 = vmatpush1.bf16.msra.mxu0 0
  %692 = vmatprep.subr.bf16.mxu0 0
  %693 = vmatpush1.bf16.msra.mxu0 0
  %694 = vmatprep.subr.bf16.mxu0 0
  %695 = vmatpush1.bf16.msra.mxu0 0
  %696 = vmatprep.subr.bf16.mxu0 0
  %697 = vmatpush1.bf16.msra.mxu0 0
  %698 = vmatprep.mubr.bf16.mxu0 0
  %699 = vmatmul.mubr.bf16.gmra.mrb[0].mxu0 %v607
  %v700 = vpop.f32.mrb[0].mxu0
  %v701 = vadd.f32 %v579, %v700
  %v702 = vpop.f32.mrb[0].mxu0
  %v703 = vpop.f32.mrb[0].mxu0
  %v704 = vadd.f32 %v579, %v703
  %v705 = vpop.f32.mrb[0].mxu0
  %706 = vmatprep.mubr.bf16.mxu0 0
  %707 = vmatmul.mubr.bf16.gmra.mrb[0].mxu0 %v610
  %v708 = vpop.f32.mrb[0].mxu0
  %v709 = vadd.f32 %v579, %v708
  %v710 = vpop.f32.mrb[0].mxu0
  %v711 = vpop.f32.mrb[0].mxu0
  %v712 = vadd.f32 %v579, %v711
  %v713 = vpop.f32.mrb[0].mxu0
  %714 = vmatprep.mubr.bf16.mxu0 0
  %715 = vmatmul.mubr.bf16.gmra.mrb[0].mxu0 %v613
  %v716 = vpop.f32.mrb[0].mxu0
  %v717 = vadd.f32 %v579, %v716
  %v718 = vpop.f32.mrb[0].mxu0
  %v719 = vpop.f32.mrb[0].mxu0
  %v720 = vadd.f32 %v579, %v719
  %v721 = vpop.f32.mrb[0].mxu0
  %722 = vmatprep.mubr.bf16.mxu0 0
  %723 = vmatmul.mubr.bf16.gmra.mrb[0].mxu0 %v616
  %v724 = vpop.f32.mrb[0].mxu0
  %v725 = vadd.f32 %v579, %v724
  %v726 = vpop.f32.mrb[0].mxu0
  %v727 = vpop.f32.mrb[0].mxu0
  %v728 = vadd.f32 %v579, %v727
  %v729 = vpop.f32.mrb[0].mxu0
  %730 = vmatprep.mubr.bf16.mxu0 0
  %731 = vmatmul.mubr.bf16.gmra.mrb[0].mxu0 %v619
  %v732 = vpop.f32.mrb[0].mxu0
  %v733 = vadd.f32 %v579, %v732
  %v734 = vpop.f32.mrb[0].mxu0
  %v735 = vpop.f32.mrb[0].mxu0
  %v736 = vadd.f32 %v579, %v735
  %v737 = vpop.f32.mrb[0].mxu0
  %738 = vmatprep.mubr.bf16.mxu0 0
  %739 = vmatmul.mubr.bf16.gmra.mrb[0].mxu0 %v622
  %v740 = vpop.f32.mrb[0].mxu0
  %v741 = vadd.f32 %v579, %v740
  %v742 = vpop.f32.mrb[0].mxu0
  %v743 = vpop.f32.mrb[0].mxu0
  %v744 = vadd.f32 %v579, %v743
  %v745 = vpop.f32.mrb[0].mxu0
  %746 = vmatprep.mubr.bf16.mxu0 0
  %747 = vmatmul.mubr.bf16.gmra.mrb[0].mxu0 %v625
  %v748 = vpop.f32.mrb[0].mxu0
  %v749 = vadd.f32 %v579, %v748
  %v750 = vpop.f32.mrb[0].mxu0
  %v751 = vpop.f32.mrb[0].mxu0
  %v752 = vadd.f32 %v579, %v751
  %v753 = vpop.f32.mrb[0].mxu0
  %754 = vmatprep.mubr.bf16.mxu0 0
  %755 = vmatmul.mubr.bf16.gmra.mrb[0].mxu0 %v628
  %v756 = vpop.f32.mrb[0].mxu0
  %v757 = vadd.f32 %v579, %v756
  %v758 = vpop.f32.mrb[0].mxu0
  %v759 = vpop.f32.mrb[0].mxu0
  %v760 = vadd.f32 %v579, %v759
  %v761 = vpop.f32.mrb[0].mxu0
  %762 = vmatprep.mubr.bf16.mxu0 0
  %763 = vmatmul.mubr.bf16.gmra.mrb[0].mxu0 %v631
  %v764 = vpop.f32.mrb[0].mxu0
  %v765 = vadd.f32 %v579, %v764
  %v766 = vpop.f32.mrb[0].mxu0
  %v767 = vpop.f32.mrb[0].mxu0
  %v768 = vadd.f32 %v579, %v767
  %v769 = vpop.f32.mrb[0].mxu0
  %770 = vmatprep.mubr.bf16.mxu0 0
  %771 = vmatmul.mubr.bf16.gmra.mrb[0].mxu0 %v634
  %v772 = vpop.f32.mrb[0].mxu0
  %v773 = vadd.f32 %v579, %v772
  %v774 = vpop.f32.mrb[0].mxu0
  %v775 = vpop.f32.mrb[0].mxu0
  %v776 = vadd.f32 %v579, %v775
  %v777 = vpop.f32.mrb[0].mxu0
  %778 = vmatprep.mubr.bf16.mxu0 0
  %779 = vmatmul.mubr.bf16.gmra.mrb[0].mxu0 %v637
  %v780 = vpop.f32.mrb[0].mxu0
  %v781 = vadd.f32 %v579, %v780
  %v782 = vpop.f32.mrb[0].mxu0
  %v783 = vpop.f32.mrb[0].mxu0
  %v784 = vadd.f32 %v579, %v783
  %v785 = vpop.f32.mrb[0].mxu0
  %786 = vmatprep.mubr.bf16.mxu0 0
  %787 = vmatmul.mubr.bf16.gmra.mrb[0].mxu0 %v640
  %v788 = vpop.f32.mrb[0].mxu0
  %v789 = vadd.f32 %v579, %v788
  %v790 = vpop.f32.mrb[0].mxu0
  %v791 = vpop.f32.mrb[0].mxu0
  %v792 = vadd.f32 %v579, %v791
  %v793 = vpop.f32.mrb[0].mxu0
  %794 = vmatprep.mubr.bf16.mxu0 0
  %795 = vmatmul.mubr.bf16.gmra.mrb[0].mxu0 %v643
  %v796 = vpop.f32.mrb[0].mxu0
  %v797 = vadd.f32 %v579, %v796
  %v798 = vpop.f32.mrb[0].mxu0
  %v799 = vpop.f32.mrb[0].mxu0
  %v800 = vadd.f32 %v579, %v799
  %v801 = vpop.f32.mrb[0].mxu0
  %802 = vmatprep.mubr.bf16.mxu0 0
  %803 = vmatmul.mubr.bf16.gmra.mrb[0].mxu0 %v646
  %v804 = vpop.f32.mrb[0].mxu0
  %v805 = vadd.f32 %v579, %v804
  %v806 = vpop.f32.mrb[0].mxu0
  %v807 = vpop.f32.mrb[0].mxu0
  %v808 = vadd.f32 %v579, %v807
  %v809 = vpop.f32.mrb[0].mxu0
  %810 = vmatprep.mubr.bf16.mxu0 0
  %811 = vmatmul.mubr.bf16.gmra.mrb[0].mxu0 %v649
  %v812 = vpop.f32.mrb[0].mxu0
  %v813 = vadd.f32 %v579, %v812
  %v814 = vpop.f32.mrb[0].mxu0
  %v815 = vpop.f32.mrb[0].mxu0
  %v816 = vadd.f32 %v579, %v815
  %v817 = vpop.f32.mrb[0].mxu0
  %818 = vmatprep.mubr.bf16.mxu0 0
  %819 = vmatmul.mubr.bf16.gmra.mrb[0].mxu0 %v652
  %v820 = vpop.f32.mrb[0].mxu0
  %v821 = vadd.f32 %v579, %v820
  %v822 = vpop.f32.mrb[0].mxu0
  %v823 = vpop.f32.mrb[0].mxu0
  %v824 = vadd.f32 %v579, %v823
  %v825 = vpop.f32.mrb[0].mxu0
  %826 = vmatprep.mubr.bf16.mxu0 0
  %827 = vmatmul.mubr.bf16.gmra.mrb[0].mxu0 %v655
  %v828 = vpop.f32.mrb[0].mxu0
  %v829 = vadd.f32 %v579, %v828
  %v830 = vpop.f32.mrb[0].mxu0
  %v831 = vpop.f32.mrb[0].mxu0
  %v832 = vadd.f32 %v579, %v831
  %v833 = vpop.f32.mrb[0].mxu0
  %834 = vmatprep.mubr.bf16.mxu0 0
  %835 = vmatmul.mubr.bf16.gmra.mrb[0].mxu0 %v658
  %v836 = vpop.f32.mrb[0].mxu0
  %v837 = vadd.f32 %v579, %v836
  %v838 = vpop.f32.mrb[0].mxu0
  %v839 = vpop.f32.mrb[0].mxu0
  %v840 = vadd.f32 %v579, %v839
  %v841 = vpop.f32.mrb[0].mxu0
  %842 = vmatprep.mubr.bf16.mxu0 0
  %843 = vmatmul.mubr.bf16.gmra.mrb[0].mxu0 %v661
  %v844 = vpop.f32.mrb[0].mxu0
  %v845 = vadd.f32 %v579, %v844
  %v846 = vpop.f32.mrb[0].mxu0
  %v847 = vpop.f32.mrb[0].mxu0
  %v848 = vadd.f32 %v579, %v847
  %v849 = vpop.f32.mrb[0].mxu0
  %850 = vmatprep.mubr.bf16.mxu0 0
  %851 = vmatmul.mubr.bf16.gmra.mrb[0].mxu0 %v664
  %v852 = vpop.f32.mrb[0].mxu0
  %v853 = vadd.f32 %v579, %v852
  %v854 = vpop.f32.mrb[0].mxu0
  %v855 = vpop.f32.mrb[0].mxu0
  %v856 = vadd.f32 %v579, %v855
  %v857 = vpop.f32.mrb[0].mxu0
  %858 = vdwg.mxu0
  %v859 = vmax.f32 %v701, 0.0
  %v860 = vmax.f32 %v704, 0.0
  %v861 = vmax.f32 %v709, 0.0
  %v862 = vmax.f32 %v712, 0.0
  %v863 = vmax.f32 %v717, 0.0
  %v864 = vmax.f32 %v720, 0.0
  %v865 = vmax.f32 %v725, 0.0
  %v866 = vmax.f32 %v728, 0.0
  %v867 = vmax.f32 %v733, 0.0
  %v868 = vmax.f32 %v736, 0.0
  %v869 = vmax.f32 %v741, 0.0
  %v870 = vmax.f32 %v744, 0.0
  %v871 = vmax.f32 %v749, 0.0
  %v872 = vmax.f32 %v752, 0.0
  %v873 = vmax.f32 %v757, 0.0
  %v874 = vmax.f32 %v760, 0.0
  %v875 = vmax.f32 %v765, 0.0
  %v876 = vmax.f32 %v768, 0.0
  %v877 = vmax.f32 %v773, 0.0
  %v878 = vmax.f32 %v776, 0.0
  %v879 = vmax.f32 %v781, 0.0
  %v880 = vmax.f32 %v784, 0.0
  %v881 = vmax.f32 %v789, 0.0
  %v882 = vmax.f32 %v792, 0.0
  %v883 = vmax.f32 %v797, 0.0
  %v884 = vmax.f32 %v800, 0.0
  %v885 = vmax.f32 %v805, 0.0
  %v886 = vmax.f32 %v808, 0.0
  %v887 = vmax.f32 %v813, 0.0
  %v888 = vmax.f32 %v816, 0.0
  %v889 = vmax.f32 %v821, 0.0
  %v890 = vmax.f32 %v824, 0.0
  %v891 = vmax.f32 %v829, 0.0
  %v892 = vmax.f32 %v832, 0.0
  %v893 = vmax.f32 %v837, 0.0
  %v894 = vmax.f32 %v840, 0.0
  %v895 = vmax.f32 %v845, 0.0
  %v896 = vmax.f32 %v848, 0.0
  %v897 = vmax.f32 %v853, 0.0
  %v898 = vmax.f32 %v856, 0.0
  %v899 = vld [vmem:[%s2] sm:$0xff]
  %v900 = vld [vmem:[%s2 + $0x8] sm:$0xff]
  %v901 = vld [vmem:[%s2 + $0x10] sm:$0xff]
  %v902 = vld [vmem:[%s2 + $0x18] sm:$0xff]
  %v903 = vld [vmem:[%s2 + $0x20] sm:$0xff]
  %v904 = vld [vmem:[%s2 + $0x28] sm:$0xff]
  %v905 = vld [vmem:[%s2 + $0x30] sm:$0xff]
  %v906 = vld [vmem:[%s2 + $0x38] sm:$0xff]
  %v907 = vld [vmem:[%s2 + $0x40] sm:$0xff]
  %v908 = vld [vmem:[%s2 + $0x48] sm:$0xff]
  %v909 = vld [vmem:[%s2 + $0x50] sm:$0xff]
  %v910 = vld [vmem:[%s2 + $0x58] sm:$0xff]
  %v911 = vld [vmem:[%s2 + $0x60] sm:$0xff]
  %v912 = vld [vmem:[%s2 + $0x68] sm:$0xff]
  %v913 = vld [vmem:[%s2 + $0x70] sm:$0xff]
  %v914 = vld [vmem:[%s2 + $0x78] sm:$0xff]
  %v915 = vld [vmem:[%s2 + $0x80] sm:$0xff]
  %v916 = vld [vmem:[%s2 + $0x88] sm:$0xff]
  %v917 = vld [vmem:[%s2 + $0x90] sm:$0xff]
  %v918 = vld [vmem:[%s2 + $0x98] sm:$0xff]
  %v919 = vld [vmem:[%s2 + $0xa0] sm:$0xff]
  %v920 = vld [vmem:[%s2 + $0xa8] sm:$0xff]
  %v921 = vld [vmem:[%s2 + $0xb0] sm:$0xff]
  %v922 = vld [vmem:[%s2 + $0xb8] sm:$0xff]
  %v923 = vld [vmem:[%s2 + $0xc0] sm:$0xff]
  %v924 = vld [vmem:[%s2 + $0xc8] sm:$0xff]
  %v925 = vld [vmem:[%s2 + $0xd0] sm:$0xff]
  %v926 = vld [vmem:[%s2 + $0xd8] sm:$0xff]
  %v927 = vld [vmem:[%s2 + $0xe0] sm:$0xff]
  %v928 = vld [vmem:[%s2 + $0xe8] sm:$0xff]
  %v929 = vld [vmem:[%s2 + $0xf0] sm:$0xff]
  %v930 = vld [vmem:[%s2 + $0xf8] sm:$0xff]
  %v931 = vld [vmem:[%s2 + $0x100] sm:$0xff]
  %v932 = vld [vmem:[%s2 + $0x108] sm:$0xff]
  %v933 = vld [vmem:[%s2 + $0x110] sm:$0xff]
  %v934 = vld [vmem:[%s2 + $0x118] sm:$0xff]
  %v935 = vld [vmem:[%s2 + $0x120] sm:$0xff]
  %v936 = vld [vmem:[%s2 + $0x128] sm:$0xff]
  %v937 = vld [vmem:[%s2 + $0x130] sm:$0xff]
  %v938 = vld [vmem:[%s2 + $0x138] sm:$0xff]
  %v939 = vld [vmem:[%s4] sm:$0x3]
  %vm940 = vcmask 15360
  %v942 = vsel %vm940, %v899, 0
  %v945 = vsel %vm940, %v900, 0
  %v948 = vsel %vm940, %v901, 0
  %v951 = vsel %vm940, %v902, 0
  %v954 = vsel %vm940, %v903, 0
  %v957 = vsel %vm940, %v904, 0
  %v960 = vsel %vm940, %v905, 0
  %v963 = vsel %vm940, %v906, 0
  %v966 = vsel %vm940, %v907, 0
  %v969 = vsel %vm940, %v908, 0
  %v972 = vsel %vm940, %v909, 0
  %v975 = vsel %vm940, %v910, 0
  %v978 = vsel %vm940, %v911, 0
  %v981 = vsel %vm940, %v912, 0
  %v984 = vsel %vm940, %v913, 0
  %v987 = vsel %vm940, %v914, 0
  %v990 = vsel %vm940, %v915, 0
  %v993 = vsel %vm940, %v916, 0
  %v996 = vsel %vm940, %v917, 0
  %v999 = vsel %vm940, %v918, 0
  %v1002 = vsel %vm940, %v919, 0
  %v1005 = vsel %vm940, %v920, 0
  %v1008 = vsel %vm940, %v921, 0
  %v1011 = vsel %vm940, %v922, 0
  %v1014 = vsel %vm940, %v923, 0
  %v1017 = vsel %vm940, %v924, 0
  %v1020 = vsel %vm940, %v925, 0
  %v1023 = vsel %vm940, %v926, 0
  %v1026 = vsel %vm940, %v927, 0
  %v1029 = vsel %vm940, %v928, 0
  %v1032 = vsel %vm940, %v929, 0
  %v1035 = vsel %vm940, %v930, 0
  %v1038 = vsel %vm940, %v931, 0
  %v1041 = vsel %vm940, %v932, 0
  %v1044 = vsel %vm940, %v933, 0
  %v1047 = vsel %vm940, %v934, 0
  %v1050 = vsel %vm940, %v935, 0
  %v1053 = vsel %vm940, %v936, 0
  %v1056 = vsel %vm940, %v937, 0
  %v1059 = vsel %vm940, %v938, 0
  %vm1061 = vcmask 1041408
  %v1063 = vsel %vm1061, %v939, 0
  %1065 = vmatprep.subr.mxu0 0.0
  %1066 = vmatpush1.msra.mxu0 %v1063
  %1067 = vmatprep.subr.mxu0 0.0
  %1068 = vmatpush1.msra.mxu0 0.0
  %1069 = vmatprep.subr.mxu0 0.0
  %1070 = vmatpush1.msra.mxu0 0.0
  %1071 = vmatprep.subr.mxu0 0.0
  %1072 = vmatpush1.msra.mxu0 0.0
  %1073 = vmatprep.subr.mxu0 0.0
  %1074 = vmatpush1.msra.mxu0 0.0
  %1075 = vmatprep.subr.mxu0 0.0
  %1076 = vmatpush1.msra.mxu0 0.0
  %1077 = vmatprep.subr.mxu0 0.0
  %1078 = vmatpush1.msra.mxu0 0.0
  %1079 = vmatprep.subr.mxu0 0.0
  %1080 = vmatpush1.msra.mxu0 0.0
  %1081 = vmatprep.subr.mxu0 0.0
  %1082 = vmatpush1.msra.mxu0 0.0
  %1083 = vmatprep.subr.mxu0 0.0
  %1084 = vmatpush1.msra.mxu0 0.0
  %1085 = vmatprep.subr.mxu0 0.0
  %1086 = vmatpush1.msra.mxu0 0.0
  %1087 = vmatprep.subr.mxu0 0.0
  %1088 = vmatpush1.msra.mxu0 0.0
  %1089 = vmatprep.subr.mxu0 0.0
  %1090 = vmatpush1.msra.mxu0 0.0
  %1091 = vmatprep.subr.mxu0 0.0
  %1092 = vmatpush1.msra.mxu0 0.0
  %1093 = vmatprep.subr.mxu0 0.0
  %1094 = vmatpush1.msra.mxu0 0.0
  %1095 = vmatprep.subr.mxu0 0.0
  %1096 = vmatpush1.msra.mxu0 0.0
  %1097 = vmatprep.subr.mxu0 0.0
  %1098 = vmatpush1.msra.mxu0 0.0
  %1099 = vmatprep.subr.mxu0 0.0
  %1100 = vmatpush1.msra.mxu0 0.0
  %1101 = vmatprep.subr.mxu0 0.0
  %1102 = vmatpush1.msra.mxu0 0.0
  %1103 = vmatprep.subr.mxu0 0.0
  %1104 = vmatpush1.msra.mxu0 0.0
  %1105 = vmatprep.subr.mxu0 0.0
  %1106 = vmatpush1.msra.mxu0 0.0
  %1107 = vmatprep.subr.mxu0 0.0
  %1108 = vmatpush1.msra.mxu0 0.0
  %1109 = vmatprep.subr.mxu0 0.0
  %1110 = vmatpush1.msra.mxu0 0.0
  %1111 = vmatprep.subr.mxu0 0.0
  %1112 = vmatpush1.msra.mxu0 0.0
  %1113 = vmatprep.subr.mxu0 0.0
  %1114 = vmatpush1.msra.mxu0 0.0
  %1115 = vmatprep.subr.mxu0 0.0
  %1116 = vmatpush1.msra.mxu0 0.0
  %1117 = vmatprep.subr.mxu0 0.0
  %1118 = vmatpush1.msra.mxu0 0.0
  %1119 = vmatprep.subr.mxu0 0.0
  %1120 = vmatpush1.msra.mxu0 0.0
  %1121 = vmatprep.subr.mxu0 0.0
  %1122 = vmatpush1.msra.mxu0 0.0
  %1123 = vmatprep.subr.mxu0 0.0
  %1124 = vmatpush1.msra.mxu0 0.0
  %1125 = vmatprep.subr.mxu0 0.0
  %1126 = vmatpush1.msra.mxu0 0.0
  %1127 = vmatprep.subr.mxu0 0.0
  %1128 = vmatpush1.msra.mxu0 0.0
  %1129 = vmatprep.mubr.f32.mxu0 0.0
  %1130 = vmatmul.mubr.f32.gmra.mrb[0].mxu0 %v942
  %v1131 = vpop.f32.mrb[0].mxu0
  %v1132 = vadd.f32 0.0, %v1131
  %v1133 = vpop.f32.mrb[0].mxu0
  %1134 = vmatprep.mubr.f32.mxu0 0.0
  %1135 = vmatmul.mubr.f32.gmra.mrb[0].mxu0 %v945
  %v1136 = vpop.f32.mrb[0].mxu0
  %v1137 = vadd.f32 0.0, %v1136
  %v1138 = vpop.f32.mrb[0].mxu0
  %1139 = vmatprep.mubr.f32.mxu0 0.0
  %1140 = vmatmul.mubr.f32.gmra.mrb[0].mxu0 %v948
  %v1141 = vpop.f32.mrb[0].mxu0
  %v1142 = vadd.f32 0.0, %v1141
  %v1143 = vpop.f32.mrb[0].mxu0
  %1144 = vmatprep.mubr.f32.mxu0 0.0
  %1145 = vmatmul.mubr.f32.gmra.mrb[0].mxu0 %v951
  %v1146 = vpop.f32.mrb[0].mxu0
  %v1147 = vadd.f32 0.0, %v1146
  %v1148 = vpop.f32.mrb[0].mxu0
  %1149 = vmatprep.mubr.f32.mxu0 0.0
  %1150 = vmatmul.mubr.f32.gmra.mrb[0].mxu0 %v954
  %v1151 = vpop.f32.mrb[0].mxu0
  %v1152 = vadd.f32 0.0, %v1151
  %v1153 = vpop.f32.mrb[0].mxu0
  %1154 = vmatprep.mubr.f32.mxu0 0.0
  %1155 = vmatmul.mubr.f32.gmra.mrb[0].mxu0 %v957
  %v1156 = vpop.f32.mrb[0].mxu0
  %v1157 = vadd.f32 0.0, %v1156
  %v1158 = vpop.f32.mrb[0].mxu0
  %1159 = vmatprep.mubr.f32.mxu0 0.0
  %1160 = vmatmul.mubr.f32.gmra.mrb[0].mxu0 %v960
  %v1161 = vpop.f32.mrb[0].mxu0
  %v1162 = vadd.f32 0.0, %v1161
  %v1163 = vpop.f32.mrb[0].mxu0
  %1164 = vmatprep.mubr.f32.mxu0 0.0
  %1165 = vmatmul.mubr.f32.gmra.mrb[0].mxu0 %v963
  %v1166 = vpop.f32.mrb[0].mxu0
  %v1167 = vadd.f32 0.0, %v1166
  %v1168 = vpop.f32.mrb[0].mxu0
  %1169 = vmatprep.mubr.f32.mxu0 0.0
  %1170 = vmatmul.mubr.f32.gmra.mrb[0].mxu0 %v966
  %v1171 = vpop.f32.mrb[0].mxu0
  %v1172 = vadd.f32 0.0, %v1171
  %v1173 = vpop.f32.mrb[0].mxu0
  %1174 = vmatprep.mubr.f32.mxu0 0.0
  %1175 = vmatmul.mubr.f32.gmra.mrb[0].mxu0 %v969
  %v1176 = vpop.f32.mrb[0].mxu0
  %v1177 = vadd.f32 0.0, %v1176
  %v1178 = vpop.f32.mrb[0].mxu0
  %1179 = vmatprep.mubr.f32.mxu0 0.0
  %1180 = vmatmul.mubr.f32.gmra.mrb[0].mxu0 %v972
  %v1181 = vpop.f32.mrb[0].mxu0
  %v1182 = vadd.f32 0.0, %v1181
  %v1183 = vpop.f32.mrb[0].mxu0
  %1184 = vmatprep.mubr.f32.mxu0 0.0
  %1185 = vmatmul.mubr.f32.gmra.mrb[0].mxu0 %v975
  %v1186 = vpop.f32.mrb[0].mxu0
  %v1187 = vadd.f32 0.0, %v1186
  %v1188 = vpop.f32.mrb[0].mxu0
  %1189 = vmatprep.mubr.f32.mxu0 0.0
  %1190 = vmatmul.mubr.f32.gmra.mrb[0].mxu0 %v978
  %v1191 = vpop.f32.mrb[0].mxu0
  %v1192 = vadd.f32 0.0, %v1191
  %v1193 = vpop.f32.mrb[0].mxu0
  %1194 = vmatprep.mubr.f32.mxu0 0.0
  %1195 = vmatmul.mubr.f32.gmra.mrb[0].mxu0 %v981
  %v1196 = vpop.f32.mrb[0].mxu0
  %v1197 = vadd.f32 0.0, %v1196
  %v1198 = vpop.f32.mrb[0].mxu0
  %1199 = vmatprep.mubr.f32.mxu0 0.0
  %1200 = vmatmul.mubr.f32.gmra.mrb[0].mxu0 %v984
  %v1201 = vpop.f32.mrb[0].mxu0
  %v1202 = vadd.f32 0.0, %v1201
  %v1203 = vpop.f32.mrb[0].mxu0
  %1204 = vmatprep.mubr.f32.mxu0 0.0
  %1205 = vmatmul.mubr.f32.gmra.mrb[0].mxu0 %v987
  %v1206 = vpop.f32.mrb[0].mxu0
  %v1207 = vadd.f32 0.0, %v1206
  %v1208 = vpop.f32.mrb[0].mxu0
  %1209 = vmatprep.mubr.f32.mxu0 0.0
  %1210 = vmatmul.mubr.f32.gmra.mrb[0].mxu0 %v990
  %v1211 = vpop.f32.mrb[0].mxu0
  %v1212 = vadd.f32 0.0, %v1211
  %v1213 = vpop.f32.mrb[0].mxu0
  %1214 = vmatprep.mubr.f32.mxu0 0.0
  %1215 = vmatmul.mubr.f32.gmra.mrb[0].mxu0 %v993
  %v1216 = vpop.f32.mrb[0].mxu0
  %v1217 = vadd.f32 0.0, %v1216
  %v1218 = vpop.f32.mrb[0].mxu0
  %1219 = vmatprep.mubr.f32.mxu0 0.0
  %1220 = vmatmul.mubr.f32.gmra.mrb[0].mxu0 %v996
  %v1221 = vpop.f32.mrb[0].mxu0
  %v1222 = vadd.f32 0.0, %v1221
  %v1223 = vpop.f32.mrb[0].mxu0
  %1224 = vmatprep.mubr.f32.mxu0 0.0
  %1225 = vmatmul.mubr.f32.gmra.mrb[0].mxu0 %v999
  %v1226 = vpop.f32.mrb[0].mxu0
  %v1227 = vadd.f32 0.0, %v1226
  %v1228 = vpop.f32.mrb[0].mxu0
  %1229 = vmatprep.mubr.f32.mxu0 0.0
  %1230 = vmatmul.mubr.f32.gmra.mrb[0].mxu0 %v1002
  %v1231 = vpop.f32.mrb[0].mxu0
  %v1232 = vadd.f32 0.0, %v1231
  %v1233 = vpop.f32.mrb[0].mxu0
  %1234 = vmatprep.mubr.f32.mxu0 0.0
  %1235 = vmatmul.mubr.f32.gmra.mrb[0].mxu0 %v1005
  %v1236 = vpop.f32.mrb[0].mxu0
  %v1237 = vadd.f32 0.0, %v1236
  %v1238 = vpop.f32.mrb[0].mxu0
  %1239 = vmatprep.mubr.f32.mxu0 0.0
  %1240 = vmatmul.mubr.f32.gmra.mrb[0].mxu0 %v1008
  %v1241 = vpop.f32.mrb[0].mxu0
  %v1242 = vadd.f32 0.0, %v1241
  %v1243 = vpop.f32.mrb[0].mxu0
  %1244 = vmatprep.mubr.f32.mxu0 0.0
  %1245 = vmatmul.mubr.f32.gmra.mrb[0].mxu0 %v1011
  %v1246 = vpop.f32.mrb[0].mxu0
  %v1247 = vadd.f32 0.0, %v1246
  %v1248 = vpop.f32.mrb[0].mxu0
  %1249 = vmatprep.mubr.f32.mxu0 0.0
  %1250 = vmatmul.mubr.f32.gmra.mrb[0].mxu0 %v1014
  %v1251 = vpop.f32.mrb[0].mxu0
  %v1252 = vadd.f32 0.0, %v1251
  %v1253 = vpop.f32.mrb[0].mxu0
  %1254 = vmatprep.mubr.f32.mxu0 0.0
  %1255 = vmatmul.mubr.f32.gmra.mrb[0].mxu0 %v1017
  %v1256 = vpop.f32.mrb[0].mxu0
  %v1257 = vadd.f32 0.0, %v1256
  %v1258 = vpop.f32.mrb[0].mxu0
  %1259 = vmatprep.mubr.f32.mxu0 0.0
  %1260 = vmatmul.mubr.f32.gmra.mrb[0].mxu0 %v1020
  %v1261 = vpop.f32.mrb[0].mxu0
  %v1262 = vadd.f32 0.0, %v1261
  %v1263 = vpop.f32.mrb[0].mxu0
  %1264 = vmatprep.mubr.f32.mxu0 0.0
  %1265 = vmatmul.mubr.f32.gmra.mrb[0].mxu0 %v1023
  %v1266 = vpop.f32.mrb[0].mxu0
  %v1267 = vadd.f32 0.0, %v1266
  %v1268 = vpop.f32.mrb[0].mxu0
  %1269 = vmatprep.mubr.f32.mxu0 0.0
  %1270 = vmatmul.mubr.f32.gmra.mrb[0].mxu0 %v1026
  %v1271 = vpop.f32.mrb[0].mxu0
  %v1272 = vadd.f32 0.0, %v1271
  %v1273 = vpop.f32.mrb[0].mxu0
  %1274 = vmatprep.mubr.f32.mxu0 0.0
  %1275 = vmatmul.mubr.f32.gmra.mrb[0].mxu0 %v1029
  %v1276 = vpop.f32.mrb[0].mxu0
  %v1277 = vadd.f32 0.0, %v1276
  %v1278 = vpop.f32.mrb[0].mxu0
  %1279 = vmatprep.mubr.f32.mxu0 0.0
  %1280 = vmatmul.mubr.f32.gmra.mrb[0].mxu0 %v1032
  %v1281 = vpop.f32.mrb[0].mxu0
  %v1282 = vadd.f32 0.0, %v1281
  %v1283 = vpop.f32.mrb[0].mxu0
  %1284 = vmatprep.mubr.f32.mxu0 0.0
  %1285 = vmatmul.mubr.f32.gmra.mrb[0].mxu0 %v1035
  %v1286 = vpop.f32.mrb[0].mxu0
  %v1287 = vadd.f32 0.0, %v1286
  %v1288 = vpop.f32.mrb[0].mxu0
  %1289 = vmatprep.mubr.f32.mxu0 0.0
  %1290 = vmatmul.mubr.f32.gmra.mrb[0].mxu0 %v1038
  %v1291 = vpop.f32.mrb[0].mxu0
  %v1292 = vadd.f32 0.0, %v1291
  %v1293 = vpop.f32.mrb[0].mxu0
  %1294 = vmatprep.mubr.f32.mxu0 0.0
  %1295 = vmatmul.mubr.f32.gmra.mrb[0].mxu0 %v1041
  %v1296 = vpop.f32.mrb[0].mxu0
  %v1297 = vadd.f32 0.0, %v1296
  %v1298 = vpop.f32.mrb[0].mxu0
  %1299 = vmatprep.mubr.f32.mxu0 0.0
  %1300 = vmatmul.mubr.f32.gmra.mrb[0].mxu0 %v1044
  %v1301 = vpop.f32.mrb[0].mxu0
  %v1302 = vadd.f32 0.0, %v1301
  %v1303 = vpop.f32.mrb[0].mxu0
  %1304 = vmatprep.mubr.f32.mxu0 0.0
  %1305 = vmatmul.mubr.f32.gmra.mrb[0].mxu0 %v1047
  %v1306 = vpop.f32.mrb[0].mxu0
  %v1307 = vadd.f32 0.0, %v1306
  %v1308 = vpop.f32.mrb[0].mxu0
  %1309 = vmatprep.mubr.f32.mxu0 0.0
  %1310 = vmatmul.mubr.f32.gmra.mrb[0].mxu0 %v1050
  %v1311 = vpop.f32.mrb[0].mxu0
  %v1312 = vadd.f32 0.0, %v1311
  %v1313 = vpop.f32.mrb[0].mxu0
  %1314 = vmatprep.mubr.f32.mxu0 0.0
  %1315 = vmatmul.mubr.f32.gmra.mrb[0].mxu0 %v1053
  %v1316 = vpop.f32.mrb[0].mxu0
  %v1317 = vadd.f32 0.0, %v1316
  %v1318 = vpop.f32.mrb[0].mxu0
  %1319 = vmatprep.mubr.f32.mxu0 0.0
  %1320 = vmatmul.mubr.f32.gmra.mrb[0].mxu0 %v1056
  %v1321 = vpop.f32.mrb[0].mxu0
  %v1322 = vadd.f32 0.0, %v1321
  %v1323 = vpop.f32.mrb[0].mxu0
  %1324 = vmatprep.mubr.f32.mxu0 0.0
  %1325 = vmatmul.mubr.f32.gmra.mrb[0].mxu0 %v1059
  %v1326 = vpop.f32.mrb[0].mxu0
  %v1327 = vadd.f32 0.0, %v1326
  %v1328 = vpop.f32.mrb[0].mxu0
  %1329 = vdwg.mxu0
  %v1330 = vmul.f32 %v859, %v1132
  %v1331 = vmul.f32 %v860, %v1137
  %v1332 = vmul.f32 %v861, %v1142
  %v1333 = vmul.f32 %v862, %v1147
  %v1334 = vmul.f32 %v863, %v1152
  %v1335 = vmul.f32 %v864, %v1157
  %v1336 = vmul.f32 %v865, %v1162
  %v1337 = vmul.f32 %v866, %v1167
  %v1338 = vmul.f32 %v867, %v1172
  %v1339 = vmul.f32 %v868, %v1177
  %v1340 = vmul.f32 %v869, %v1182
  %v1341 = vmul.f32 %v870, %v1187
  %v1342 = vmul.f32 %v871, %v1192
  %v1343 = vmul.f32 %v872, %v1197
  %v1344 = vmul.f32 %v873, %v1202
  %v1345 = vmul.f32 %v874, %v1207
  %v1346 = vmul.f32 %v875, %v1212
  %v1347 = vmul.f32 %v876, %v1217
  %v1348 = vmul.f32 %v877, %v1222
  %v1349 = vmul.f32 %v878, %v1227
  %v1350 = vmul.f32 %v879, %v1232
  %v1351 = vmul.f32 %v880, %v1237
  %v1352 = vmul.f32 %v881, %v1242
  %v1353 = vmul.f32 %v882, %v1247
  %v1354 = vmul.f32 %v883, %v1252
  %v1355 = vmul.f32 %v884, %v1257
  %v1356 = vmul.f32 %v885, %v1262
  %v1357 = vmul.f32 %v886, %v1267
  %v1358 = vmul.f32 %v887, %v1272
  %v1359 = vmul.f32 %v888, %v1277
  %v1360 = vmul.f32 %v889, %v1282
  %v1361 = vmul.f32 %v890, %v1287
  %v1362 = vmul.f32 %v891, %v1292
  %v1363 = vmul.f32 %v892, %v1297
  %v1364 = vmul.f32 %v893, %v1302
  %v1365 = vmul.f32 %v894, %v1307
  %v1366 = vmul.f32 %v895, %v1312
  %v1367 = vmul.f32 %v896, %v1317
  %v1368 = vmul.f32 %v897, %v1322
  %v1369 = vmul.f32 %v898, %v1327
  %v1371 = vsel %vm605, %v106, 0
  %v1374 = vsel %vm605, %v109, 0
  %v1377 = vsel %vm605, %v112, 0
  %v1380 = vsel %vm605, %v115, 0
  %v1383 = vsel %vm605, %v118, 0
  %v1386 = vsel %vm605, %v121, 0
  %v1389 = vsel %vm605, %v124, 0
  %v1392 = vsel %vm605, %v127, 0
  %v1395 = vsel %vm605, %v130, 0
  %v1398 = vsel %vm605, %v133, 0
  %1400 = vmatprep.subr.mxu0 0.0
  %1401 = vmatpush1.msra.mxu0 %v1330
  %1402 = vmatprep.subr.mxu0 0.0
  %1403 = vmatpush1.msra.mxu0 %v1331
  %1404 = vmatprep.subr.mxu0 0.0
  %1405 = vmatpush1.msra.mxu0 %v1332
  %1406 = vmatprep.subr.mxu0 0.0
  %1407 = vmatpush1.msra.mxu0 %v1333
  %1408 = vmatprep.subr.mxu0 0.0
  %1409 = vmatpush1.msra.mxu0 %v1334
  %1410 = vmatprep.subr.mxu0 0.0
  %1411 = vmatpush1.msra.mxu0 %v1335
  %1412 = vmatprep.subr.mxu0 0.0
  %1413 = vmatpush1.msra.mxu0 %v1336
  %1414 = vmatprep.subr.mxu0 0.0
  %1415 = vmatpush1.msra.mxu0 %v1337
  %1416 = vmatprep.subr.mxu0 0.0
  %1417 = vmatpush1.msra.mxu0 %v1338
  %1418 = vmatprep.subr.mxu0 0.0
  %1419 = vmatpush1.msra.mxu0 %v1339
  %1420 = vmatprep.subr.mxu0 0.0
  %1421 = vmatpush1.msra.mxu0 %v1340
  %1422 = vmatprep.subr.mxu0 0.0
  %1423 = vmatpush1.msra.mxu0 %v1341
  %1424 = vmatprep.subr.mxu0 0.0
  %1425 = vmatpush1.msra.mxu0 %v1342
  %1426 = vmatprep.subr.mxu0 0.0
  %1427 = vmatpush1.msra.mxu0 %v1343
  %1428 = vmatprep.subr.mxu0 0.0
  %1429 = vmatpush1.msra.mxu0 %v1344
  %1430 = vmatprep.subr.mxu0 0.0
  %1431 = vmatpush1.msra.mxu0 %v1345
  %1432 = vmatprep.subr.mxu0 0.0
  %1433 = vmatpush1.msra.mxu0 %v1346
  %1434 = vmatprep.subr.mxu0 0.0
  %1435 = vmatpush1.msra.mxu0 %v1347
  %1436 = vmatprep.subr.mxu0 0.0
  %1437 = vmatpush1.msra.mxu0 %v1348
  %1438 = vmatprep.subr.mxu0 0.0
  %1439 = vmatpush1.msra.mxu0 %v1349
  %1440 = vmatprep.subr.mxu0 0.0
  %1441 = vmatpush1.msra.mxu0 %v1350
  %1442 = vmatprep.subr.mxu0 0.0
  %1443 = vmatpush1.msra.mxu0 %v1351
  %1444 = vmatprep.subr.mxu0 0.0
  %1445 = vmatpush1.msra.mxu0 %v1352
  %1446 = vmatprep.subr.mxu0 0.0
  %1447 = vmatpush1.msra.mxu0 %v1353
  %1448 = vmatprep.subr.mxu0 0.0
  %1449 = vmatpush1.msra.mxu0 %v1354
  %1450 = vmatprep.subr.mxu0 0.0
  %1451 = vmatpush1.msra.mxu0 %v1355
  %1452 = vmatprep.subr.mxu0 0.0
  %1453 = vmatpush1.msra.mxu0 %v1356
  %1454 = vmatprep.subr.mxu0 0.0
  %1455 = vmatpush1.msra.mxu0 %v1357
  %1456 = vmatprep.subr.mxu0 0.0
  %1457 = vmatpush1.msra.mxu0 %v1358
  %1458 = vmatprep.subr.mxu0 0.0
  %1459 = vmatpush1.msra.mxu0 %v1359
  %1460 = vmatprep.subr.mxu0 0.0
  %1461 = vmatpush1.msra.mxu0 %v1360
  %1462 = vmatprep.subr.mxu0 0.0
  %1463 = vmatpush1.msra.mxu0 %v1361
  %1464 = vmatprep.mubr.f32.mxu0 %v105
  %1465 = vmatmul.mubr.f32.gmra.mrb[0].mxu0 %v104
  %v1466 = vpop.f32.mrb[0].mxu0
  %v1467 = vadd.f32 0.0, %v1466
  %v1468 = vpop.f32.mrb[0].mxu0
  %1469 = vmatprep.mubr.f32.mxu0 %v108
  %1470 = vmatmul.mubr.f32.gmra.mrb[0].mxu0 %v107
  %v1471 = vpop.f32.mrb[0].mxu0
  %v1472 = vadd.f32 0.0, %v1471
  %v1473 = vpop.f32.mrb[0].mxu0
  %1474 = vmatprep.mubr.f32.mxu0 %v111
  %1475 = vmatmul.mubr.f32.gmra.mrb[0].mxu0 %v110
  %v1476 = vpop.f32.mrb[0].mxu0
  %v1477 = vadd.f32 0.0, %v1476
  %v1478 = vpop.f32.mrb[0].mxu0
  %1479 = vmatprep.mubr.f32.mxu0 %v114
  %1480 = vmatmul.mubr.f32.gmra.mrb[0].mxu0 %v113
  %v1481 = vpop.f32.mrb[0].mxu0
  %v1482 = vadd.f32 0.0, %v1481
  %v1483 = vpop.f32.mrb[0].mxu0
  %1484 = vmatprep.mubr.f32.mxu0 %v117
  %1485 = vmatmul.mubr.f32.gmra.mrb[0].mxu0 %v116
  %v1486 = vpop.f32.mrb[0].mxu0
  %v1487 = vadd.f32 0.0, %v1486
  %v1488 = vpop.f32.mrb[0].mxu0
  %1489 = vmatprep.mubr.f32.mxu0 %v120
  %1490 = vmatmul.mubr.f32.gmra.mrb[0].mxu0 %v119
  %v1491 = vpop.f32.mrb[0].mxu0
  %v1492 = vadd.f32 0.0, %v1491
  %v1493 = vpop.f32.mrb[0].mxu0
  %1494 = vmatprep.mubr.f32.mxu0 %v123
  %1495 = vmatmul.mubr.f32.gmra.mrb[0].mxu0 %v122
  %v1496 = vpop.f32.mrb[0].mxu0
  %v1497 = vadd.f32 0.0, %v1496
  %v1498 = vpop.f32.mrb[0].mxu0
  %1499 = vmatprep.mubr.f32.mxu0 %v126
  %1500 = vmatmul.mubr.f32.gmra.mrb[0].mxu0 %v125
  %v1501 = vpop.f32.mrb[0].mxu0
  %v1502 = vadd.f32 0.0, %v1501
  %v1503 = vpop.f32.mrb[0].mxu0
  %1504 = vmatprep.mubr.f32.mxu0 %v129
  %1505 = vmatmul.mubr.f32.gmra.mrb[0].mxu0 %v128
  %v1506 = vpop.f32.mrb[0].mxu0
  %v1507 = vadd.f32 0.0, %v1506
  %v1508 = vpop.f32.mrb[0].mxu0
  %1509 = vmatprep.mubr.f32.mxu0 %v132
  %1510 = vmatmul.mubr.f32.gmra.mrb[0].mxu0 %v131
  %v1511 = vpop.f32.mrb[0].mxu0
  %v1512 = vadd.f32 0.0, %v1511
  %v1513 = vpop.f32.mrb[0].mxu0
  %1514 = vdwg.mxu0
  %1515 = vmatprep.subr.mxu0 0.0
  %1516 = vmatpush1.msra.mxu0 %v1362
  %1517 = vmatprep.subr.mxu0 0.0
  %1518 = vmatpush1.msra.mxu0 %v1363
  %1519 = vmatprep.subr.mxu0 0.0
  %1520 = vmatpush1.msra.mxu0 %v1364
  %1521 = vmatprep.subr.mxu0 0.0
  %1522 = vmatpush1.msra.mxu0 %v1365
  %1523 = vmatprep.subr.mxu0 0.0
  %1524 = vmatpush1.msra.mxu0 %v1366
  %1525 = vmatprep.subr.mxu0 0.0
  %1526 = vmatpush1.msra.mxu0 %v1367
  %1527 = vmatprep.subr.mxu0 0.0
  %1528 = vmatpush1.msra.mxu0 %v1368
  %1529 = vmatprep.subr.mxu0 0.0
  %1530 = vmatpush1.msra.mxu0 %v1369
  %1531 = vmatprep.subr.mxu0 0.0
  %1532 = vmatpush1.msra.mxu0 0.0
  %1533 = vmatprep.subr.mxu0 0.0
  %1534 = vmatpush1.msra.mxu0 0.0
  %1535 = vmatprep.subr.mxu0 0.0
  %1536 = vmatpush1.msra.mxu0 0.0
  %1537 = vmatprep.subr.mxu0 0.0
  %1538 = vmatpush1.msra.mxu0 0.0
  %1539 = vmatprep.subr.mxu0 0.0
  %1540 = vmatpush1.msra.mxu0 0.0
  %1541 = vmatprep.subr.mxu0 0.0
  %1542 = vmatpush1.msra.mxu0 0.0
  %1543 = vmatprep.subr.mxu0 0.0
  %1544 = vmatpush1.msra.mxu0 0.0
  %1545 = vmatprep.subr.mxu0 0.0
  %1546 = vmatpush1.msra.mxu0 0.0
  %1547 = vmatprep.subr.mxu0 0.0
  %1548 = vmatpush1.msra.mxu0 0.0
  %1549 = vmatprep.subr.mxu0 0.0
  %1550 = vmatpush1.msra.mxu0 0.0
  %1551 = vmatprep.subr.mxu0 0.0
  %1552 = vmatpush1.msra.mxu0 0.0
  %1553 = vmatprep.subr.mxu0 0.0
  %1554 = vmatpush1.msra.mxu0 0.0
  %1555 = vmatprep.subr.mxu0 0.0
  %1556 = vmatpush1.msra.mxu0 0.0
  %1557 = vmatprep.subr.mxu0 0.0
  %1558 = vmatpush1.msra.mxu0 0.0
  %1559 = vmatprep.subr.mxu0 0.0
  %1560 = vmatpush1.msra.mxu0 0.0
  %1561 = vmatprep.subr.mxu0 0.0
  %1562 = vmatpush1.msra.mxu0 0.0
  %1563 = vmatprep.subr.mxu0 0.0
  %1564 = vmatpush1.msra.mxu0 0.0
  %1565 = vmatprep.subr.mxu0 0.0
  %1566 = vmatpush1.msra.mxu0 0.0
  %1567 = vmatprep.subr.mxu0 0.0
  %1568 = vmatpush1.msra.mxu0 0.0
  %1569 = vmatprep.subr.mxu0 0.0
  %1570 = vmatpush1.msra.mxu0 0.0
  %1571 = vmatprep.subr.mxu0 0.0
  %1572 = vmatpush1.msra.mxu0 0.0
  %1573 = vmatprep.subr.mxu0 0.0
  %1574 = vmatpush1.msra.mxu0 0.0
  %1575 = vmatprep.subr.mxu0 0.0
  %1576 = vmatpush1.msra.mxu0 0.0
  %1577 = vmatprep.subr.mxu0 0.0
  %1578 = vmatpush1.msra.mxu0 0.0
  %1579 = vmatprep.mubr.f32.mxu0 0.0
  %1580 = vmatmul.mubr.f32.gmra.mrb[0].mxu0 %v1371
  %v1581 = vpop.f32.mrb[0].mxu0
  %v1582 = vadd.f32 %v1467, %v1581
  %v1583 = vpop.f32.mrb[0].mxu0
  %1584 = vmatprep.mubr.f32.mxu0 0.0
  %1585 = vmatmul.mubr.f32.gmra.mrb[0].mxu0 %v1374
  %v1586 = vpop.f32.mrb[0].mxu0
  %v1587 = vadd.f32 %v1472, %v1586
  %v1588 = vpop.f32.mrb[0].mxu0
  %1589 = vmatprep.mubr.f32.mxu0 0.0
  %1590 = vmatmul.mubr.f32.gmra.mrb[0].mxu0 %v1377
  %v1591 = vpop.f32.mrb[0].mxu0
  %v1592 = vadd.f32 %v1477, %v1591
  %v1593 = vpop.f32.mrb[0].mxu0
  %1594 = vmatprep.mubr.f32.mxu0 0.0
  %1595 = vmatmul.mubr.f32.gmra.mrb[0].mxu0 %v1380
  %v1596 = vpop.f32.mrb[0].mxu0
  %v1597 = vadd.f32 %v1482, %v1596
  %v1598 = vpop.f32.mrb[0].mxu0
  %1599 = vmatprep.mubr.f32.mxu0 0.0
  %1600 = vmatmul.mubr.f32.gmra.mrb[0].mxu0 %v1383
  %v1601 = vpop.f32.mrb[0].mxu0
  %v1602 = vadd.f32 %v1487, %v1601
  %v1603 = vpop.f32.mrb[0].mxu0
  %1604 = vmatprep.mubr.f32.mxu0 0.0
  %1605 = vmatmul.mubr.f32.gmra.mrb[0].mxu0 %v1386
  %v1606 = vpop.f32.mrb[0].mxu0
  %v1607 = vadd.f32 %v1492, %v1606
  %v1608 = vpop.f32.mrb[0].mxu0
  %1609 = vmatprep.mubr.f32.mxu0 0.0
  %1610 = vmatmul.mubr.f32.gmra.mrb[0].mxu0 %v1389
  %v1611 = vpop.f32.mrb[0].mxu0
  %v1612 = vadd.f32 %v1497, %v1611
  %v1613 = vpop.f32.mrb[0].mxu0
  %1614 = vmatprep.mubr.f32.mxu0 0.0
  %1615 = vmatmul.mubr.f32.gmra.mrb[0].mxu0 %v1392
  %v1616 = vpop.f32.mrb[0].mxu0
  %v1617 = vadd.f32 %v1502, %v1616
  %v1618 = vpop.f32.mrb[0].mxu0
  %1619 = vmatprep.mubr.f32.mxu0 0.0
  %1620 = vmatmul.mubr.f32.gmra.mrb[0].mxu0 %v1395
  %v1621 = vpop.f32.mrb[0].mxu0
  %v1622 = vadd.f32 %v1507, %v1621
  %v1623 = vpop.f32.mrb[0].mxu0
  %1624 = vmatprep.mubr.f32.mxu0 0.0
  %1625 = vmatmul.mubr.f32.gmra.mrb[0].mxu0 %v1398
  %v1626 = vpop.f32.mrb[0].mxu0
  %v1627 = vadd.f32 %v1512, %v1626
  %v1628 = vpop.f32.mrb[0].mxu0
  %1629 = vdwg.mxu0
  %v1630 = vpack.c.bf16 %v55, %v54
  %v1631 = vpack.c.bf16 %v57, %v56
  %v1632 = vpack.c.bf16 %v59, %v58
  %v1633 = vpack.c.bf16 %v61, %v60
  %v1634 = vpack.c.bf16 %v63, %v62
  %v1635 = vld [vmem:[%s9] sm:$0x7]
  %v1636 = vpack.c.bf16 %v1587, %v1582
  %v1637 = vpack.c.bf16 %v1597, %v1592
  %v1638 = vpack.c.bf16 %v1607, %v1602
  %v1639 = vpack.c.bf16 %v1617, %v1612
  %v1640 = vpack.c.bf16 %v1627, %v1622
  %v1641 = vld [vmem:[%s10] sm:$0xf]
  %v1642 = vld [vmem:[%s10 + $0x4] sm:$0xf]
  %v1643 = vld [vmem:[%s10 + $0x8] sm:$0xf]
  %v1644 = vld [vmem:[%s10 + $0xc] sm:$0xf]
  %v1645 = vld [vmem:[%s10 + $0x10] sm:$0xf]
  %v1646 = vld [vmem:[%s10 + $0x14] sm:$0xf]
  %v1647 = vld [vmem:[%s10 + $0x18] sm:$0xf]
  %v1648 = vld [vmem:[%s10 + $0x1c] sm:$0xf]
  %v1657 = vunpack.c.l.b16 %v1641
  %v1658 = vunpack.c.l.b16 %v1642
  %v1659 = vunpack.c.l.b16 %v1643
  %v1660 = vunpack.c.l.b16 %v1644
  %v1661 = vunpack.c.l.b16 %v1645
  %v1662 = vunpack.c.l.b16 %v1646
  %v1663 = vunpack.c.l.b16 %v1647
  %v1664 = vunpack.c.l.b16 %v1648
  %v1665 = vpack.c.b16 %v1658, %v1657
  %v1666 = vpack.c.b16 %v1660, %v1659
  %v1667 = vpack.c.b16 %v1662, %v1661
  %v1668 = vpack.c.b16 %v1664, %v1663
  %v1674 = vsel %vm605, %v1636, 0
  %v1677 = vsel %vm605, %v1637, 0
  %v1680 = vsel %vm605, %v1638, 0
  %v1683 = vsel %vm605, %v1639, 0
  %v1686 = vsel %vm605, %v1640, 0
  %1688 = vmatprep.subr.bf16.mxu0 0
  %1689 = vmatpush1.bf16.msra.mxu0 %v1665
  %1690 = vmatprep.subr.bf16.mxu0 0
  %1691 = vmatpush1.bf16.msra.mxu0 %v1666
  %1692 = vmatprep.subr.bf16.mxu0 0
  %1693 = vmatpush1.bf16.msra.mxu0 %v1667
  %1694 = vmatprep.subr.bf16.mxu0 0
  %1695 = vmatpush1.bf16.msra.mxu0 %v1668
  %1696 = vmatprep.subr.bf16.mxu0 0
  %1697 = vmatpush1.bf16.msra.mxu0 0
  %1698 = vmatprep.subr.bf16.mxu0 0
  %1699 = vmatpush1.bf16.msra.mxu0 0
  %1700 = vmatprep.subr.bf16.mxu0 0
  %1701 = vmatpush1.bf16.msra.mxu0 0
  %1702 = vmatprep.subr.bf16.mxu0 0
  %1703 = vmatpush1.bf16.msra.mxu0 0
  %1704 = vmatprep.subr.bf16.mxu0 0
  %1705 = vmatpush1.bf16.msra.mxu0 0
  %1706 = vmatprep.subr.bf16.mxu0 0
  %1707 = vmatpush1.bf16.msra.mxu0 0
  %1708 = vmatprep.subr.bf16.mxu0 0
  %1709 = vmatpush1.bf16.msra.mxu0 0
  %1710 = vmatprep.subr.bf16.mxu0 0
  %1711 = vmatpush1.bf16.msra.mxu0 0
  %1712 = vmatprep.subr.bf16.mxu0 0
  %1713 = vmatpush1.bf16.msra.mxu0 0
  %1714 = vmatprep.subr.bf16.mxu0 0
  %1715 = vmatpush1.bf16.msra.mxu0 0
  %1716 = vmatprep.subr.bf16.mxu0 0
  %1717 = vmatpush1.bf16.msra.mxu0 0
  %1718 = vmatprep.subr.bf16.mxu0 0
  %1719 = vmatpush1.bf16.msra.mxu0 0
  %1720 = vmatprep.mubr.bf16.mxu0 0
  %1721 = vmatmul.mubr.bf16.gmra.mrb[0].mxu0 %v1674
  %v1722 = vpop.f32.mrb[0].mxu0
  %v1723 = vadd.f32 0.0, %v1722
  %v1724 = vpop.f32.mrb[0].mxu0
  %v1725 = vpop.f32.mrb[0].mxu0
  %v1726 = vadd.f32 0.0, %v1725
  %v1727 = vpop.f32.mrb[0].mxu0
  %1728 = vmatprep.mubr.bf16.mxu0 0
  %1729 = vmatmul.mubr.bf16.gmra.mrb[0].mxu0 %v1677
  %v1730 = vpop.f32.mrb[0].mxu0
  %v1731 = vadd.f32 0.0, %v1730
  %v1732 = vpop.f32.mrb[0].mxu0
  %v1733 = vpop.f32.mrb[0].mxu0
  %v1734 = vadd.f32 0.0, %v1733
  %v1735 = vpop.f32.mrb[0].mxu0
  %1736 = vmatprep.mubr.bf16.mxu0 0
  %1737 = vmatmul.mubr.bf16.gmra.mrb[0].mxu0 %v1680
  %v1738 = vpop.f32.mrb[0].mxu0
  %v1739 = vadd.f32 0.0, %v1738
  %v1740 = vpop.f32.mrb[0].mxu0
  %v1741 = vpop.f32.mrb[0].mxu0
  %v1742 = vadd.f32 0.0, %v1741
  %v1743 = vpop.f32.mrb[0].mxu0
  %1744 = vmatprep.mubr.bf16.mxu0 0
  %1745 = vmatmul.mubr.bf16.gmra.mrb[0].mxu0 %v1683
  %v1746 = vpop.f32.mrb[0].mxu0
  %v1747 = vadd.f32 0.0, %v1746
  %v1748 = vpop.f32.mrb[0].mxu0
  %v1749 = vpop.f32.mrb[0].mxu0
  %v1750 = vadd.f32 0.0, %v1749
  %v1751 = vpop.f32.mrb[0].mxu0
  %1752 = vmatprep.mubr.bf16.mxu0 0
  %1753 = vmatmul.mubr.bf16.gmra.mrb[0].mxu0 %v1686
  %v1754 = vpop.f32.mrb[0].mxu0
  %v1755 = vadd.f32 0.0, %v1754
  %v1756 = vpop.f32.mrb[0].mxu0
  %v1757 = vpop.f32.mrb[0].mxu0
  %v1758 = vadd.f32 0.0, %v1757
  %v1759 = vpop.f32.mrb[0].mxu0
  %1760 = vdwg.mxu0
  %vm1761 = vcmask 48128
  %v1763 = vsel %vm1761, %v1630, 0
  %v1766 = vsel %vm1761, %v1631, 0
  %v1769 = vsel %vm1761, %v1632, 0
  %v1772 = vsel %vm1761, %v1633, 0
  %v1775 = vsel %vm1761, %v1634, 0
  %vm1777 = vcmask 1042432
  %v1779 = vsel %vm1777, %v1635, 0
  %1781 = vmatprep.subr.bf16.mxu0 0
  %1782 = vmatpush1.bf16.msra.mxu0 %v1779
  %1783 = vmatprep.subr.bf16.mxu0 0
  %1784 = vmatpush1.bf16.msra.mxu0 0
  %1785 = vmatprep.subr.bf16.mxu0 0
  %1786 = vmatpush1.bf16.msra.mxu0 0
  %1787 = vmatprep.subr.bf16.mxu0 0
  %1788 = vmatpush1.bf16.msra.mxu0 0
  %1789 = vmatprep.subr.bf16.mxu0 0
  %1790 = vmatpush1.bf16.msra.mxu0 0
  %1791 = vmatprep.subr.bf16.mxu0 0
  %1792 = vmatpush1.bf16.msra.mxu0 0
  %1793 = vmatprep.subr.bf16.mxu0 0
  %1794 = vmatpush1.bf16.msra.mxu0 0
  %1795 = vmatprep.subr.bf16.mxu0 0
  %1796 = vmatpush1.bf16.msra.mxu0 0
  %1797 = vmatprep.subr.bf16.mxu0 0
  %1798 = vmatpush1.bf16.msra.mxu0 0
  %1799 = vmatprep.subr.bf16.mxu0 0
  %1800 = vmatpush1.bf16.msra.mxu0 0
  %1801 = vmatprep.subr.bf16.mxu0 0
  %1802 = vmatpush1.bf16.msra.mxu0 0
  %1803 = vmatprep.subr.bf16.mxu0 0
  %1804 = vmatpush1.bf16.msra.mxu0 0
  %1805 = vmatprep.subr.bf16.mxu0 0
  %1806 = vmatpush1.bf16.msra.mxu0 0
  %1807 = vmatprep.subr.bf16.mxu0 0
  %1808 = vmatpush1.bf16.msra.mxu0 0
  %1809 = vmatprep.subr.bf16.mxu0 0
  %1810 = vmatpush1.bf16.msra.mxu0 0
  %1811 = vmatprep.subr.bf16.mxu0 0
  %1812 = vmatpush1.bf16.msra.mxu0 0
  %1813 = vmatprep.mubr.bf16.mxu0 0
  %1814 = vmatmul.mubr.bf16.gmra.mrb[0].mxu0 %v1763
  %v1815 = vpop.f32.mrb[0].mxu0
  %v1816 = vadd.f32 %v1723, %v1815
  %v1817 = vpop.f32.mrb[0].mxu0
  %v1818 = vpop.f32.mrb[0].mxu0
  %v1819 = vadd.f32 %v1726, %v1818
  %v1820 = vpop.f32.mrb[0].mxu0
  %1821 = vmatprep.mubr.bf16.mxu0 0
  %1822 = vmatmul.mubr.bf16.gmra.mrb[0].mxu0 %v1766
  %v1823 = vpop.f32.mrb[0].mxu0
  %v1824 = vadd.f32 %v1731, %v1823
  %v1825 = vpop.f32.mrb[0].mxu0
  %v1826 = vpop.f32.mrb[0].mxu0
  %v1827 = vadd.f32 %v1734, %v1826
  %v1828 = vpop.f32.mrb[0].mxu0
  %1829 = vmatprep.mubr.bf16.mxu0 0
  %1830 = vmatmul.mubr.bf16.gmra.mrb[0].mxu0 %v1769
  %v1831 = vpop.f32.mrb[0].mxu0
  %v1832 = vadd.f32 %v1739, %v1831
  %v1833 = vpop.f32.mrb[0].mxu0
  %v1834 = vpop.f32.mrb[0].mxu0
  %v1835 = vadd.f32 %v1742, %v1834
  %v1836 = vpop.f32.mrb[0].mxu0
  %1837 = vmatprep.mubr.bf16.mxu0 0
  %1838 = vmatmul.mubr.bf16.gmra.mrb[0].mxu0 %v1772
  %v1839 = vpop.f32.mrb[0].mxu0
  %v1840 = vadd.f32 %v1747, %v1839
  %v1841 = vpop.f32.mrb[0].mxu0
  %v1842 = vpop.f32.mrb[0].mxu0
  %v1843 = vadd.f32 %v1750, %v1842
  %v1844 = vpop.f32.mrb[0].mxu0
  %1845 = vmatprep.mubr.bf16.mxu0 0
  %1846 = vmatmul.mubr.bf16.gmra.mrb[0].mxu0 %v1775
  %v1847 = vpop.f32.mrb[0].mxu0
  %v1848 = vadd.f32 %v1755, %v1847
  %v1849 = vpop.f32.mrb[0].mxu0
  %v1850 = vpop.f32.mrb[0].mxu0
  %v1851 = vadd.f32 %v1758, %v1850
  %v1852 = vpop.f32.mrb[0].mxu0
  %1853 = vdwg.mxu0
  %v1854 = vld [vmem:[%s11] sm:$0x1]
  %v1856 = vlaneseq
  %v1857 = vshrl.u32 %v1856, 7
  %v1858 = vsub.s32 0, %v1857
  %v1859 = vrot.slane %v1854, %v1858
  %v1861 = vadd.f32 %v1816, %v1859
  %v1862 = vadd.f32 %v1819, %v1859
  %v1863 = vadd.f32 %v1824, %v1859
  %v1864 = vadd.f32 %v1827, %v1859
  %v1865 = vadd.f32 %v1832, %v1859
  %v1866 = vadd.f32 %v1835, %v1859
  %v1867 = vadd.f32 %v1840, %v1859
  %v1868 = vadd.f32 %v1843, %v1859
  %v1869 = vadd.f32 %v1848, %v1859
  %v1870 = vadd.f32 %v1851, %v1859
  %v1871 = vmax.f32 %v1861, 0.0
  %v1872 = vmax.f32 %v1862, 0.0
  %v1873 = vmax.f32 %v1863, 0.0
  %v1874 = vmax.f32 %v1864, 0.0
  %v1875 = vmax.f32 %v1865, 0.0
  %v1876 = vmax.f32 %v1866, 0.0
  %v1877 = vmax.f32 %v1867, 0.0
  %v1878 = vmax.f32 %v1868, 0.0
  %v1879 = vmax.f32 %v1869, 0.0
  %v1880 = vmax.f32 %v1870, 0.0
  %v1881 = vpack.c.bf16 %v1872, %v1871
  %v1882 = vpack.c.bf16 %v1874, %v1873
  %v1883 = vpack.c.bf16 %v1876, %v1875
  %v1884 = vpack.c.bf16 %v1878, %v1877
  %v1885 = vpack.c.bf16 %v1880, %v1879
  %v1886 = vld [vmem:[%s12] sm:$0xf]
  %v1887 = vld [vmem:[%s12 + $0x4] sm:$0xf]
  %v1888 = vld [vmem:[%s12 + $0x8] sm:$0xf]
  %v1889 = vld [vmem:[%s12 + $0xc] sm:$0xf]
  %v1890 = vld [vmem:[%s13] sm:$0x1]
  %v1892 = vlaneseq
  %v1893 = vshrl.u32 %v1892, 7
  %v1894 = vsub.s32 0, %v1893
  %v1895 = vrot.slane %v1890, %v1894
  %v1901 = vunpack.c.l.b16 %v1886
  %v1902 = vunpack.c.l.b16 %v1887
  %v1903 = vunpack.c.l.b16 %v1888
  %v1904 = vunpack.c.l.b16 %v1889
  %v1905 = vpack.c.b16 %v1902, %v1901
  %v1906 = vpack.c.b16 %v1904, %v1903
  %vm1909 = vcmask 261120
  %v1911 = vsel %vm1909, %v1881, 0
  %v1914 = vsel %vm1909, %v1882, 0
  %v1917 = vsel %vm1909, %v1883, 0
  %v1920 = vsel %vm1909, %v1884, 0
  %v1923 = vsel %vm1909, %v1885, 0
  %1925 = vmatprep.subr.bf16.mxu0 0
  %1926 = vmatpush1.bf16.msra.mxu0 %v1905
  %1927 = vmatprep.subr.bf16.mxu0 0
  %1928 = vmatpush1.bf16.msra.mxu0 %v1906
  %1929 = vmatprep.subr.bf16.mxu0 0
  %1930 = vmatpush1.bf16.msra.mxu0 0
  %1931 = vmatprep.subr.bf16.mxu0 0
  %1932 = vmatpush1.bf16.msra.mxu0 0
  %1933 = vmatprep.subr.bf16.mxu0 0
  %1934 = vmatpush1.bf16.msra.mxu0 0
  %1935 = vmatprep.subr.bf16.mxu0 0
  %1936 = vmatpush1.bf16.msra.mxu0 0
  %1937 = vmatprep.subr.bf16.mxu0 0
  %1938 = vmatpush1.bf16.msra.mxu0 0
  %1939 = vmatprep.subr.bf16.mxu0 0
  %1940 = vmatpush1.bf16.msra.mxu0 0
  %1941 = vmatprep.subr.bf16.mxu0 0
  %1942 = vmatpush1.bf16.msra.mxu0 0
  %1943 = vmatprep.subr.bf16.mxu0 0
  %1944 = vmatpush1.bf16.msra.mxu0 0
  %1945 = vmatprep.subr.bf16.mxu0 0
  %1946 = vmatpush1.bf16.msra.mxu0 0
  %1947 = vmatprep.subr.bf16.mxu0 0
  %1948 = vmatpush1.bf16.msra.mxu0 0
  %1949 = vmatprep.subr.bf16.mxu0 0
  %1950 = vmatpush1.bf16.msra.mxu0 0
  %1951 = vmatprep.subr.bf16.mxu0 0
  %1952 = vmatpush1.bf16.msra.mxu0 0
  %1953 = vmatprep.subr.bf16.mxu0 0
  %1954 = vmatpush1.bf16.msra.mxu0 0
  %1955 = vmatprep.subr.bf16.mxu0 0
  %1956 = vmatpush1.bf16.msra.mxu0 0
  %1957 = vmatprep.mubr.bf16.mxu0 0
  %1958 = vmatmul.mubr.bf16.gmra.mrb[0].mxu0 %v1911
  %v1959 = vpop.f32.mrb[0].mxu0
  %v1960 = vadd.f32 %v1895, %v1959
  %v1961 = vpop.f32.mrb[0].mxu0
  %v1962 = vpop.f32.mrb[0].mxu0
  %v1963 = vadd.f32 %v1895, %v1962
  %v1964 = vpop.f32.mrb[0].mxu0
  %1965 = vmatprep.mubr.bf16.mxu0 0
  %1966 = vmatmul.mubr.bf16.gmra.mrb[0].mxu0 %v1914
  %v1967 = vpop.f32.mrb[0].mxu0
  %v1968 = vadd.f32 %v1895, %v1967
  %v1969 = vpop.f32.mrb[0].mxu0
  %v1970 = vpop.f32.mrb[0].mxu0
  %v1971 = vadd.f32 %v1895, %v1970
  %v1972 = vpop.f32.mrb[0].mxu0
  %1973 = vmatprep.mubr.bf16.mxu0 0
  %1974 = vmatmul.mubr.bf16.gmra.mrb[0].mxu0 %v1917
  %v1975 = vpop.f32.mrb[0].mxu0
  %v1976 = vadd.f32 %v1895, %v1975
  %v1977 = vpop.f32.mrb[0].mxu0
  %v1978 = vpop.f32.mrb[0].mxu0
  %v1979 = vadd.f32 %v1895, %v1978
  %v1980 = vpop.f32.mrb[0].mxu0
  %1981 = vmatprep.mubr.bf16.mxu0 0
  %1982 = vmatmul.mubr.bf16.gmra.mrb[0].mxu0 %v1920
  %v1983 = vpop.f32.mrb[0].mxu0
  %v1984 = vadd.f32 %v1895, %v1983
  %v1985 = vpop.f32.mrb[0].mxu0
  %v1986 = vpop.f32.mrb[0].mxu0
  %v1987 = vadd.f32 %v1895, %v1986
  %v1988 = vpop.f32.mrb[0].mxu0
  %1989 = vmatprep.mubr.bf16.mxu0 0
  %1990 = vmatmul.mubr.bf16.gmra.mrb[0].mxu0 %v1923
  %v1991 = vpop.f32.mrb[0].mxu0
  %v1992 = vadd.f32 %v1895, %v1991
  %v1993 = vpop.f32.mrb[0].mxu0
  %v1994 = vpop.f32.mrb[0].mxu0
  %v1995 = vadd.f32 %v1895, %v1994
  %v1996 = vpop.f32.mrb[0].mxu0
  %1997 = vdwg.mxu0
  %v1998 = vmax.f32 %v1960, 0.0
  %v1999 = vmax.f32 %v1963, 0.0
  %v2000 = vmax.f32 %v1968, 0.0
  %v2001 = vmax.f32 %v1971, 0.0
  %v2002 = vmax.f32 %v1976, 0.0
  %v2003 = vmax.f32 %v1979, 0.0
  %v2004 = vmax.f32 %v1984, 0.0
  %v2005 = vmax.f32 %v1987, 0.0
  %v2006 = vmax.f32 %v1992, 0.0
  %v2007 = vmax.f32 %v1995, 0.0
  %v2008 = vpack.c.bf16 %v1999, %v1998
  %v2009 = vpack.c.bf16 %v2001, %v2000
  %v2010 = vpack.c.bf16 %v2003, %v2002
  %v2011 = vpack.c.bf16 %v2005, %v2004
  %v2012 = vpack.c.bf16 %v2007, %v2006
  %v2013 = vld [vmem:[%s14] sm:$0xf]
  %v2014 = vld [vmem:[%s14 + $0x4] sm:$0xf]
  %v2015 = vld [vmem:[%s14 + $0x8] sm:$0xf]
  %v2016 = vld [vmem:[%s14 + $0xc] sm:$0xf]
  %v2017 = vld [vmem:[%s15] sm:$0x1]
  %v2019 = vlaneseq
  %v2020 = vshrl.u32 %v2019, 7
  %v2021 = vsub.s32 0, %v2020
  %v2022 = vrot.slane %v2017, %v2021
  %v2028 = vunpack.c.l.b16 %v2013
  %v2029 = vunpack.c.l.b16 %v2014
  %v2030 = vunpack.c.l.b16 %v2015
  %v2031 = vunpack.c.l.b16 %v2016
  %v2032 = vpack.c.b16 %v2029, %v2028
  %v2033 = vpack.c.b16 %v2031, %v2030
  %v2037 = vsel %vm1909, %v2008, 0
  %v2040 = vsel %vm1909, %v2009, 0
  %v2043 = vsel %vm1909, %v2010, 0
  %v2046 = vsel %vm1909, %v2011, 0
  %v2049 = vsel %vm1909, %v2012, 0
  %2051 = vmatprep.subr.bf16.mxu0 0
  %2052 = vmatpush1.bf16.msra.mxu0 %v2032
  %2053 = vmatprep.subr.bf16.mxu0 0
  %2054 = vmatpush1.bf16.msra.mxu0 %v2033
  %2055 = vmatprep.subr.bf16.mxu0 0
  %2056 = vmatpush1.bf16.msra.mxu0 0
  %2057 = vmatprep.subr.bf16.mxu0 0
  %2058 = vmatpush1.bf16.msra.mxu0 0
  %2059 = vmatprep.subr.bf16.mxu0 0
  %2060 = vmatpush1.bf16.msra.mxu0 0
  %2061 = vmatprep.subr.bf16.mxu0 0
  %2062 = vmatpush1.bf16.msra.mxu0 0
  %2063 = vmatprep.subr.bf16.mxu0 0
  %2064 = vmatpush1.bf16.msra.mxu0 0
  %2065 = vmatprep.subr.bf16.mxu0 0
  %2066 = vmatpush1.bf16.msra.mxu0 0
  %2067 = vmatprep.subr.bf16.mxu0 0
  %2068 = vmatpush1.bf16.msra.mxu0 0
  %2069 = vmatprep.subr.bf16.mxu0 0
  %2070 = vmatpush1.bf16.msra.mxu0 0
  %2071 = vmatprep.subr.bf16.mxu0 0
  %2072 = vmatpush1.bf16.msra.mxu0 0
  %2073 = vmatprep.subr.bf16.mxu0 0
  %2074 = vmatpush1.bf16.msra.mxu0 0
  %2075 = vmatprep.subr.bf16.mxu0 0
  %2076 = vmatpush1.bf16.msra.mxu0 0
  %2077 = vmatprep.subr.bf16.mxu0 0
  %2078 = vmatpush1.bf16.msra.mxu0 0
  %2079 = vmatprep.subr.bf16.mxu0 0
  %2080 = vmatpush1.bf16.msra.mxu0 0
  %2081 = vmatprep.subr.bf16.mxu0 0
  %2082 = vmatpush1.bf16.msra.mxu0 0
  %2083 = vmatprep.mubr.bf16.mxu0 0
  %2084 = vmatmul.mubr.bf16.gmra.mrb[0].mxu0 %v2037
  %v2085 = vpop.f32.mrb[0].mxu0
  %v2086 = vadd.f32 %v2022, %v2085
  %v2087 = vpop.f32.mrb[0].mxu0
  %v2088 = vpop.f32.mrb[0].mxu0
  %v2089 = vadd.f32 %v2022, %v2088
  %v2090 = vpop.f32.mrb[0].mxu0
  %2091 = vmatprep.mubr.bf16.mxu0 0
  %2092 = vmatmul.mubr.bf16.gmra.mrb[0].mxu0 %v2040
  %v2093 = vpop.f32.mrb[0].mxu0
  %v2094 = vadd.f32 %v2022, %v2093
  %v2095 = vpop.f32.mrb[0].mxu0
  %v2096 = vpop.f32.mrb[0].mxu0
  %v2097 = vadd.f32 %v2022, %v2096
  %v2098 = vpop.f32.mrb[0].mxu0
  %2099 = vmatprep.mubr.bf16.mxu0 0
  %2100 = vmatmul.mubr.bf16.gmra.mrb[0].mxu0 %v2043
  %v2101 = vpop.f32.mrb[0].mxu0
  %v2102 = vadd.f32 %v2022, %v2101
  %v2103 = vpop.f32.mrb[0].mxu0
  %v2104 = vpop.f32.mrb[0].mxu0
  %v2105 = vadd.f32 %v2022, %v2104
  %v2106 = vpop.f32.mrb[0].mxu0
  %2107 = vmatprep.mubr.bf16.mxu0 0
  %2108 = vmatmul.mubr.bf16.gmra.mrb[0].mxu0 %v2046
  %v2109 = vpop.f32.mrb[0].mxu0
  %v2110 = vadd.f32 %v2022, %v2109
  %v2111 = vpop.f32.mrb[0].mxu0
  %v2112 = vpop.f32.mrb[0].mxu0
  %v2113 = vadd.f32 %v2022, %v2112
  %v2114 = vpop.f32.mrb[0].mxu0
  %2115 = vmatprep.mubr.bf16.mxu0 0
  %2116 = vmatmul.mubr.bf16.gmra.mrb[0].mxu0 %v2049
  %v2117 = vpop.f32.mrb[0].mxu0
  %v2118 = vadd.f32 %v2022, %v2117
  %v2119 = vpop.f32.mrb[0].mxu0
  %v2120 = vpop.f32.mrb[0].mxu0
  %v2121 = vadd.f32 %v2022, %v2120
  %v2122 = vpop.f32.mrb[0].mxu0
  %2123 = vdwg.mxu0
  %v2124 = vadd.f32 %v54, %v2086
  %v2125 = vadd.f32 %v55, %v2089
  %v2126 = vadd.f32 %v56, %v2094
  %v2127 = vadd.f32 %v57, %v2097
  %v2128 = vadd.f32 %v58, %v2102
  %v2129 = vadd.f32 %v59, %v2105
  %v2130 = vadd.f32 %v60, %v2110
  %v2131 = vadd.f32 %v61, %v2113
  %v2132 = vadd.f32 %v62, %v2118
  %v2133 = vadd.f32 %v63, %v2121
  %2134 = vst.msk [vmem:[%s16] sm:$0xff] %vm1761, %v2124
  %2135 = vst.msk [vmem:[%s16 + $0x8] sm:$0xff] %vm1761, %v2125
  %2136 = vst.msk [vmem:[%s16 + $0x10] sm:$0xff] %vm1761, %v2126
  %2137 = vst.msk [vmem:[%s16 + $0x18] sm:$0xff] %vm1761, %v2127
  %2138 = vst.msk [vmem:[%s16 + $0x20] sm:$0xff] %vm1761, %v2128
  %2139 = vst.msk [vmem:[%s16 + $0x28] sm:$0xff] %vm1761, %v2129
  %2140 = vst.msk [vmem:[%s16 + $0x30] sm:$0xff] %vm1761, %v2130
  %2141 = vst.msk [vmem:[%s16 + $0x38] sm:$0xff] %vm1761, %v2131
  %2142 = vst.msk [vmem:[%s16 + $0x40] sm:$0xff] %vm1761, %v2132
  %2143 = vst.msk [vmem:[%s16 + $0x48] sm:$0xff] %vm1761, %v2133
  // Predicated region
  $region66: #{tpu_custom_call.1} parent=0 // pred_check
    _
  $region67: #{tpu_custom_call.1} parent=0 // pred_check_branch
    %2145 = sbr.rel (0) target = $region69
  $region68: #{tpu_custom_call.1} parent=0 // pred_region
    _
  $region69: #{tpu_custom_call.1} parent=0 // pred_fallthru
    _
  // Predicated region
  $region70: #{tpu_custom_call.1} parent=0 // pred_check
    _
  $region71: #{tpu_custom_call.1} parent=0 // pred_check_branch
    %2147 = sbr.rel (0) target = $region73
  $region72: #{tpu_custom_call.1} parent=0 // pred_region
    _
  $region73: #{tpu_custom_call.1} parent=0 // pred_fallthru
    _

</llo_original>
